<compile_context>
chip_gen: v6e
topology: v6e:2x2x1
jax: 0.10.0
libtpu: 0.0.40
codegen_flags: <defaults>
</compile_context>

<pallas_src>
import functools

import jax
import jax.numpy as jnp
from jax.experimental import pallas as pl
from jax.experimental.pallas import tpu as pltpu

# ----------------------------- model dims -----------------------------------
NUM_TREATMENTS = 4
NUM_COVARIATES = 8
NUM_OUTPUTS = 2
MAX_SEQ_LEN = 8
BR_SIZE = 16
RNN_HIDDEN = 32
FC_HIDDEN = 32
RNN_KEEP_PROB = 1.0          # dropout p = 1 - keep_prob = 0 -> identity

PACK_USED = BR_SIZE + NUM_TREATMENTS + NUM_OUTPUTS   # 22 useful lanes
PACK_WIDTH = 128                                     # lane-dense packed output


def _elu(v):
    # Negative branch clamped so the unselected branch of `where` is finite.
    return jnp.where(v > 0, v, jnp.exp(jnp.minimum(v, 0.0)) - 1.0)


# --------------------------- fused CRN kernel --------------------------------
def _crn_kernel(cov_ref, treat_ref,
                w_ih_ref, w_hh_ref, b_lstm_ref,
                w_br_ref, b_br_ref,
                w_t1_ref, b_t1_ref, w_t2_ref, b_t2_ref,
                w_o1b_ref, w_o1t_ref, b_o1_ref, w_o2_ref, b_o2_ref,
                packed_ref, hn_ref, cn_ref,
                rnn_sc,
                *, batch, seq):
    B, T, H = batch, seq, RNN_HIDDEN
    f32 = jnp.float32

    # ---------------- LSTM ----------------
    # Hoisted input projection: one MXU op covering every (b, t) row.
    # Rows are batch-major: row index = b*T + t (matches rnn_output.reshape).
    gates_pre = (jnp.dot(cov_ref[...], w_ih_ref[...],
                         preferred_element_type=f32)
                 + b_lstm_ref[...])                        # (B*T, 4H)

    w_hh = w_hh_ref[...]                                   # (H, 4H)
    h = jnp.zeros((B, H), f32)
    c = jnp.zeros((B, H), f32)

    # Fully unrolled recurrence (T static); only h @ W_hh is on the serial path.
    for t in range(T):
        # Gather the precomputed x-projection rows for time t (batch-major).
        g_x = jnp.concatenate(
            [gates_pre[b * T + t: b * T + t + 1, :] for b in range(B)], axis=0)
        gates = g_x + jnp.dot(h, w_hh, preferred_element_type=f32)   # (B, 4H)

        i_g = jax.nn.sigmoid(gates[:, 0 * H:1 * H])
        f_g = jax.nn.sigmoid(gates[:, 1 * H:2 * H])
        g_g = jnp.tanh(gates[:, 2 * H:3 * H])
        o_g = jax.nn.sigmoid(gates[:, 3 * H:4 * H])

        c = f_g * c + i_g * g_g
        h = o_g * jnp.tanh(c)

        # Scatter this step's hidden state into batch-major rows b*T + t.
        for b in range(B):
            rnn_sc[b * T + t: b * T + t + 1, :] = h[b: b + 1, :]

    hn_ref[...] = h            # written once, after the last step
    cn_ref[...] = c

    # ---------------- MLP heads on flattened (B*T, H) rnn output -------------
    x = rnn_sc[...]            # (B*T, H); dropout p=0 -> identity
    tr = treat_ref[...]        # (B*T, NT)

    # br_layer = LipLinear (plain Linear here) + ELU
    br = _elu(jnp.dot(x, w_br_ref[...], preferred_element_type=f32)
              + b_br_ref[...])

    # treatment_layer on FlipGradient(br) (identity fwd), then softmax
    th = _elu(jnp.dot(br, w_t1_ref[...], preferred_element_type=f32)
              + b_t1_ref[...])
    logits = (jnp.dot(th, w_t2_ref[...], preferred_element_type=f32)
              + b_t2_ref[...])
    logits = logits - jnp.max(logits, axis=-1, keepdims=True)
    e = jnp.exp(logits)
    probs = e * pl.reciprocal(jnp.sum(e, axis=-1, keepdims=True))

    # outcome_layer on cat(br, treatments): split matmul (identical algebra)
    oh = _elu(jnp.dot(br, w_o1b_ref[...], preferred_element_type=f32)
              + jnp.dot(tr, w_o1t_ref[...], preferred_element_type=f32)
              + b_o1_ref[...])
    outc = (jnp.dot(oh, w_o2_ref[...], preferred_element_type=f32)
            + b_o2_ref[...])

    # Lane-dense packed output: [br | probs | outc | zero pad] -> one store.
    n = B * T
    pad = jnp.zeros((n, PACK_WIDTH - PACK_USED), f32)
    packed_ref[...] = jnp.concatenate([br, probs, outc, pad], axis=-1)


def run_crn(cov2d, treat2d, p, *, batch, seq):
    n = batch * seq
    vmem = pl.BlockSpec(memory_space=pltpu.MemorySpace.VMEM)
    ins = (cov2d, treat2d,
           p['w_ih_t'], p['w_hh_t'], p['b_lstm'],
           p['w_br_t'], p['b_br'],
           p['w_t1_t'], p['b_t1'], p['w_t2_t'], p['b_t2'],
           p['w_o1_br_t'], p['w_o1_tr_t'], p['b_o1'],
           p['w_o2_t'], p['b_o2'])
    kernel = functools.partial(_crn_kernel, batch=batch, seq=seq)
    return pl.pallas_call(
        kernel,
        out_shape=(
            jax.ShapeDtypeStruct((n, PACK_WIDTH), jnp.float32),
            jax.ShapeDtypeStruct((batch, RNN_HIDDEN), jnp.float32),
            jax.ShapeDtypeStruct((batch, RNN_HIDDEN), jnp.float32),
        ),
        in_specs=[vmem] * len(ins),
        out_specs=(vmem, vmem, vmem),
        scratch_shapes=[pltpu.VMEM((n, RNN_HIDDEN), jnp.float32)],
    )(*ins)


# ------------------------------- params --------------------------------------
def init_params(key):
    """All weights stored pre-transposed: shape (in, out) == PyTorch weight.T."""
    ks = jax.random.split(key, 16)
    H, C = RNN_HIDDEN, NUM_COVARIATES
    s = 0.1
    return {
        'w_ih_t':    s * jax.random.normal(ks[0], (C, 4 * H), jnp.float32),
        'w_hh_t':    s * jax.random.normal(ks[1], (H, 4 * H), jnp.float32),
        # nn.LSTM has b_ih and b_hh; a real checkpoint loader must sum them.
        'b_lstm':    s * jax.random.normal(ks[2], (1, 4 * H), jnp.float32),
        'w_br_t':    s * jax.random.normal(ks[3], (H, BR_SIZE), jnp.float32),
        'b_br':      s * jax.random.normal(ks[4], (1, BR_SIZE), jnp.float32),
        'w_t1_t':    s * jax.random.normal(ks[5], (BR_SIZE, FC_HIDDEN), jnp.float32),
        'b_t1':      s * jax.random.normal(ks[6], (1, FC_HIDDEN), jnp.float32),
        'w_t2_t':    s * jax.random.normal(ks[7], (FC_HIDDEN, NUM_TREATMENTS), jnp.float32),
        'b_t2':      s * jax.random.normal(ks[8], (1, NUM_TREATMENTS), jnp.float32),
        # outcome first Linear over cat(br, treat), stored pre-split + pre-transposed:
        'w_o1_br_t': s * jax.random.normal(ks[9], (BR_SIZE, FC_HIDDEN), jnp.float32),
        'w_o1_tr_t': s * jax.random.normal(ks[10], (NUM_TREATMENTS, FC_HIDDEN), jnp.float32),
        'b_o1':      s * jax.random.normal(ks[11], (1, FC_HIDDEN), jnp.float32),
        'w_o2_t':    s * jax.random.normal(ks[12], (FC_HIDDEN, NUM_OUTPUTS), jnp.float32),
        'b_o2':      s * jax.random.normal(ks[13], (1, NUM_OUTPUTS), jnp.float32),
    }


# ------------------------------- forward --------------------------------------
def crn_forward(params, current_covariates, current_treatments, init_states=None,
                alpha=1.0):
    """Matches CRNModel.forward with b_train_decoder=False.

    current_covariates: (B, T, num_covariates)   [PyTorch batch_first]
    current_treatments: (B, T, num_treatments)
    init_states: ignored (encoder LSTM starts from zeros, as in nn.LSTM(x))
    alpha: only feeds FlipGradient (identity in forward) -> unused here.
    """
    del init_states, alpha
    B, T, _ = current_covariates.shape
    # Batch-major flattens are free views (no transpose, no HBM copy).
    cov2d = current_covariates.reshape(B * T, NUM_COVARIATES).astype(jnp.float32)
    treat2d = current_treatments.reshape(B * T, NUM_TREATMENTS).astype(jnp.float32)

    packed, h_n, c_n = run_crn(cov2d, treat2d, params, batch=B, seq=T)

    o0, o1 = BR_SIZE, BR_SIZE + NUM_TREATMENTS
    balance_representation = packed[:, :o0].reshape(B, T, BR_SIZE)
    treatment_prob_predictions = packed[:, o0:o1].reshape(B, T, NUM_TREATMENTS)
    outcome_predictions = packed[:, o1:o1 + NUM_OUTPUTS].reshape(B, T, NUM_OUTPUTS)
    hx_output = (h_n[None, :, :], c_n[None, :, :])   # (1, B, H) like PyTorch
    return (balance_representation, treatment_prob_predictions,
            outcome_predictions, hx_output)


# --------------------------- pure-JAX reference --------------------------------
def _crn_reference(params, cov, treat):
    B, T, _ = cov.shape
    H = RNN_HIDDEN
    hi = jax.lax.Precision.HIGHEST

    def step(carry, x_t):
        h, c = carry
        gates = (jnp.dot(x_t, params['w_ih_t'], precision=hi)
                 + jnp.dot(h, params['w_hh_t'], precision=hi)
                 + params['b_lstm'])
        i = jax.nn.sigmoid(gates[:, 0 * H:1 * H])
        f = jax.nn.sigmoid(gates[:, 1 * H:2 * H])
        g = jnp.tanh(gates[:, 2 * H:3 * H])
        o = jax.nn.sigmoid(gates[:, 3 * H:4 * H])
        c = f * c + i * g
        h = o * jnp.tanh(c)
        return (h, c), h

    h0 = jnp.zeros((B, H), jnp.float32)
    (h_n, c_n), hs = jax.lax.scan(step, (h0, h0), jnp.swapaxes(cov, 0, 1))
    rnn = jnp.swapaxes(hs, 0, 1).reshape(-1, H)
    tr = treat.reshape(-1, NUM_TREATMENTS)

    br = _elu(jnp.dot(rnn, params['w_br_t'], precision=hi) + params['b_br'])
    th = _elu(jnp.dot(br, params['w_t1_t'], precision=hi) + params['b_t1'])
    logits = jnp.dot(th, params['w_t2_t'], precision=hi) + params['b_t2']
    probs = jax.nn.softmax(logits, axis=-1)
    oh = _elu(jnp.dot(br, params['w_o1_br_t'], precision=hi)
              + jnp.dot(tr, params['w_o1_tr_t'], precision=hi) + params['b_o1'])
    outc = jnp.dot(oh, params['w_o2_t'], precision=hi) + params['b_o2']
    return (br.reshape(B, T, BR_SIZE),
            probs.reshape(B, T, NUM_TREATMENTS),
            outc.reshape(B, T, NUM_OUTPUTS),
            h_n, c_n)


# --------------------------------- main ---------------------------------------
if __name__ == "__main__":
    key = jax.random.PRNGKey(0)
    k_par, k_cov, k_tr = jax.random.split(key, 3)

    B, T = 2, MAX_SEQ_LEN
    params = init_params(k_par)
    covariates = jax.random.normal(k_cov, (B, T, NUM_COVARIATES), jnp.float32)
    treat_logits = jax.random.normal(k_tr, (B, T, NUM_TREATMENTS), jnp.float32)
    treatments = jax.nn.one_hot(jnp.argmax(treat_logits, axis=-1),
                                NUM_TREATMENTS, dtype=jnp.float32)

    bal, probs, outc, (h_n, c_n) = crn_forward(params, covariates, treatments,
                                               init_states=None, alpha=1.0)
    jax.block_until_ready((bal, probs, outc, h_n, c_n))

    # shape / basic sanity checks
    assert bal.shape == (B, T, BR_SIZE)
    assert probs.shape == (B, T, NUM_TREATMENTS)
    assert outc.shape == (B, T, NUM_OUTPUTS)
    assert h_n.shape == (1, B, RNN_HIDDEN) and c_n.shape == (1, B, RNN_HIDDEN)
    assert jnp.allclose(jnp.sum(probs, axis=-1), 1.0, atol=1e-5)

    # numerical check against a pure-JAX reference of the same forward pass
    r_bal, r_probs, r_outc, r_h, r_c = _crn_reference(params, covariates, treatments)
    tol = dict(atol=2e-3, rtol=2e-3)
    assert jnp.allclose(bal, r_bal, **tol)
    assert jnp.allclose(probs, r_probs, **tol)
    assert jnp.allclose(outc, r_outc, **tol)
    assert jnp.allclose(h_n[0], r_h, **tol)
    assert jnp.allclose(c_n[0], r_c, **tol)

    print("KERNEL_OK")
</pallas_src>

<mosaic_0001>
module attributes {stable_mosaic.version = 11 : i64} {
  func.func @_crn_kernel(%arg0: memref<16x8xf32, #tpu.memory_space<vmem>>, %arg1: memref<16x4xf32, #tpu.memory_space<vmem>>, %arg2: memref<8x128xf32, #tpu.memory_space<vmem>>, %arg3: memref<32x128xf32, #tpu.memory_space<vmem>>, %arg4: memref<1x128xf32, #tpu.memory_space<vmem>>, %arg5: memref<32x16xf32, #tpu.memory_space<vmem>>, %arg6: memref<1x16xf32, #tpu.memory_space<vmem>>, %arg7: memref<16x32xf32, #tpu.memory_space<vmem>>, %arg8: memref<1x32xf32, #tpu.memory_space<vmem>>, %arg9: memref<32x4xf32, #tpu.memory_space<vmem>>, %arg10: memref<1x4xf32, #tpu.memory_space<vmem>>, %arg11: memref<16x32xf32, #tpu.memory_space<vmem>>, %arg12: memref<4x32xf32, #tpu.memory_space<vmem>>, %arg13: memref<1x32xf32, #tpu.memory_space<vmem>>, %arg14: memref<32x2xf32, #tpu.memory_space<vmem>>, %arg15: memref<1x2xf32, #tpu.memory_space<vmem>>, %arg16: memref<16x128xf32, #tpu.memory_space<vmem>>, %arg17: memref<2x32xf32, #tpu.memory_space<vmem>>, %arg18: memref<2x32xf32, #tpu.memory_space<vmem>>, %arg19: memref<16x32xf32, #tpu.memory_space<vmem>>) attributes {dimension_semantics = [], scalar_prefetch = 0 : i64, scratch_operands = 1 : i64, tpu.core_type = #tpu.core_type<tc>} {
    %c0 = arith.constant 0 : index
    %c0_0 = arith.constant 0 : index
    %0 = vector.load %arg0[%c0, %c0_0] : memref<16x8xf32, #tpu.memory_space<vmem>>, vector<16x8xf32>
    %c0_1 = arith.constant 0 : index
    %c0_2 = arith.constant 0 : index
    %1 = vector.load %arg2[%c0_1, %c0_2] : memref<8x128xf32, #tpu.memory_space<vmem>>, vector<8x128xf32>
    %cst = arith.constant dense<0.000000e+00> : vector<16x128xf32>
    %2 = tpu.matmul %0, %1, %cst {dimension_numbers = #tpu.dot_dimension_numbers<[1], [0], [0], [1], [0, 0, 1, 1], [], []>} : vector<16x8xf32>, vector<8x128xf32>, vector<16x128xf32> -> vector<16x128xf32>
    %c0_3 = arith.constant 0 : index
    %c0_4 = arith.constant 0 : index
    %3 = vector.load %arg4[%c0_3, %c0_4] : memref<1x128xf32, #tpu.memory_space<vmem>>, vector<1x128xf32>
    %4 = vector.broadcast %3 : vector<1x128xf32> to vector<16x128xf32>
    %5 = arith.addf %2, %4 : vector<16x128xf32>
    %c0_5 = arith.constant 0 : index
    %c0_6 = arith.constant 0 : index
    %6 = vector.load %arg3[%c0_5, %c0_6] : memref<32x128xf32, #tpu.memory_space<vmem>>, vector<32x128xf32>
    %cst_7 = arith.constant 0.000000e+00 : f32
    %7 = vector.broadcast %cst_7 : f32 to vector<2x32xf32>
    %cst_8 = arith.constant 0.000000e+00 : f32
    %8 = vector.broadcast %cst_8 : f32 to vector<2x32xf32>
    %9 = vector.extract_strided_slice %5 {offsets = [0, 0], sizes = [1, 128], strides = [1, 1]} : vector<16x128xf32> to vector<1x128xf32>
    %10 = vector.extract_strided_slice %5 {offsets = [8, 0], sizes = [1, 128], strides = [1, 1]} : vector<16x128xf32> to vector<1x128xf32>
    %11 = tpu.concatenate %9, %10 in 0 : vector<1x128xf32>, vector<1x128xf32> -> vector<2x128xf32>
    %cst_9 = arith.constant dense<0.000000e+00> : vector<2x128xf32>
    %12 = tpu.matmul %7, %6, %cst_9 {dimension_numbers = #tpu.dot_dimension_numbers<[1], [0], [0], [1], [0, 0, 1, 1], [], []>} : vector<2x32xf32>, vector<32x128xf32>, vector<2x128xf32> -> vector<2x128xf32>
    %13 = arith.addf %11, %12 : vector<2x128xf32>
    %14 = vector.extract_strided_slice %13 {offsets = [0, 0], sizes = [2, 32], strides = [1, 1]} : vector<2x128xf32> to vector<2x32xf32>
    %15 = arith.negf %14 : vector<2x32xf32>
    %16 = math.exp %15 : vector<2x32xf32>
    %cst_10 = arith.constant 1.000000e+00 : f32
    %17 = vector.broadcast %cst_10 : f32 to vector<2x32xf32>
    %18 = arith.addf %17, %16 : vector<2x32xf32>
    %19 = arith.divf %17, %18 : vector<2x32xf32>
    %20 = vector.extract_strided_slice %13 {offsets = [0, 32], sizes = [2, 32], strides = [1, 1]} : vector<2x128xf32> to vector<2x32xf32>
    %21 = arith.negf %20 : vector<2x32xf32>
    %22 = math.exp %21 : vector<2x32xf32>
    %cst_11 = arith.constant 1.000000e+00 : f32
    %23 = vector.broadcast %cst_11 : f32 to vector<2x32xf32>
    %24 = arith.addf %23, %22 : vector<2x32xf32>
    %25 = arith.divf %23, %24 : vector<2x32xf32>
    %26 = vector.extract_strided_slice %13 {offsets = [0, 64], sizes = [2, 32], strides = [1, 1]} : vector<2x128xf32> to vector<2x32xf32>
    %27 = math.tanh %26 : vector<2x32xf32>
    %28 = vector.extract_strided_slice %13 {offsets = [0, 96], sizes = [2, 32], strides = [1, 1]} : vector<2x128xf32> to vector<2x32xf32>
    %29 = arith.negf %28 : vector<2x32xf32>
    %30 = math.exp %29 : vector<2x32xf32>
    %cst_12 = arith.constant 1.000000e+00 : f32
    %31 = vector.broadcast %cst_12 : f32 to vector<2x32xf32>
    %32 = arith.addf %31, %30 : vector<2x32xf32>
    %33 = arith.divf %31, %32 : vector<2x32xf32>
    %34 = arith.mulf %25, %8 : vector<2x32xf32>
    %35 = arith.mulf %19, %27 : vector<2x32xf32>
    %36 = arith.addf %34, %35 : vector<2x32xf32>
    %37 = math.tanh %36 : vector<2x32xf32>
    %38 = arith.mulf %33, %37 : vector<2x32xf32>
    %39 = vector.extract_strided_slice %38 {offsets = [0, 0], sizes = [1, 32], strides = [1, 1]} : vector<2x32xf32> to vector<1x32xf32>
    %c0_13 = arith.constant 0 : index
    %c0_14 = arith.constant 0 : index
    %40 = vector.load %arg19[%c0_13, %c0_14] : memref<16x32xf32, #tpu.memory_space<vmem>>, vector<1x32xf32>
    tpu.vector_store %arg19[%c0_13, %c0_14], %39 {strides = array<i32>} : memref<16x32xf32, #tpu.memory_space<vmem>>, vector<1x32xf32>,
    %41 = vector.extract_strided_slice %38 {offsets = [1, 0], sizes = [1, 32], strides = [1, 1]} : vector<2x32xf32> to vector<1x32xf32>
    %c8 = arith.constant 8 : index
    %c0_15 = arith.constant 0 : index
    %42 = vector.load %arg19[%c8, %c0_15] : memref<16x32xf32, #tpu.memory_space<vmem>>, vector<1x32xf32>
    tpu.vector_store %arg19[%c8, %c0_15], %41 {strides = array<i32>} : memref<16x32xf32, #tpu.memory_space<vmem>>, vector<1x32xf32>,
    %43 = vector.extract_strided_slice %5 {offsets = [1, 0], sizes = [1, 128], strides = [1, 1]} : vector<16x128xf32> to vector<1x128xf32>
    %44 = vector.extract_strided_slice %5 {offsets = [9, 0], sizes = [1, 128], strides = [1, 1]} : vector<16x128xf32> to vector<1x128xf32>
    %45 = tpu.concatenate %43, %44 in 0 : vector<1x128xf32>, vector<1x128xf32> -> vector<2x128xf32>
    %cst_16 = arith.constant dense<0.000000e+00> : vector<2x128xf32>
    %46 = tpu.matmul %38, %6, %cst_16 {dimension_numbers = #tpu.dot_dimension_numbers<[1], [0], [0], [1], [0, 0, 1, 1], [], []>} : vector<2x32xf32>, vector<32x128xf32>, vector<2x128xf32> -> vector<2x128xf32>
    %47 = arith.addf %45, %46 : vector<2x128xf32>
    %48 = vector.extract_strided_slice %47 {offsets = [0, 0], sizes = [2, 32], strides = [1, 1]} : vector<2x128xf32> to vector<2x32xf32>
    %49 = arith.negf %48 : vector<2x32xf32>
    %50 = math.exp %49 : vector<2x32xf32>
    %cst_17 = arith.constant 1.000000e+00 : f32
    %51 = vector.broadcast %cst_17 : f32 to vector<2x32xf32>
    %52 = arith.addf %51, %50 : vector<2x32xf32>
    %53 = arith.divf %51, %52 : vector<2x32xf32>
    %54 = vector.extract_strided_slice %47 {offsets = [0, 32], sizes = [2, 32], strides = [1, 1]} : vector<2x128xf32> to vector<2x32xf32>
    %55 = arith.negf %54 : vector<2x32xf32>
    %56 = math.exp %55 : vector<2x32xf32>
    %cst_18 = arith.constant 1.000000e+00 : f32
    %57 = vector.broadcast %cst_18 : f32 to vector<2x32xf32>
    %58 = arith.addf %57, %56 : vector<2x32xf32>
    %59 = arith.divf %57, %58 : vector<2x32xf32>
    %60 = vector.extract_strided_slice %47 {offsets = [0, 64], sizes = [2, 32], strides = [1, 1]} : vector<2x128xf32> to vector<2x32xf32>
    %61 = math.tanh %60 : vector<2x32xf32>
    %62 = vector.extract_strided_slice %47 {offsets = [0, 96], sizes = [2, 32], strides = [1, 1]} : vector<2x128xf32> to vector<2x32xf32>
    %63 = arith.negf %62 : vector<2x32xf32>
    %64 = math.exp %63 : vector<2x32xf32>
    %cst_19 = arith.constant 1.000000e+00 : f32
    %65 = vector.broadcast %cst_19 : f32 to vector<2x32xf32>
    %66 = arith.addf %65, %64 : vector<2x32xf32>
    %67 = arith.divf %65, %66 : vector<2x32xf32>
    %68 = arith.mulf %59, %36 : vector<2x32xf32>
    %69 = arith.mulf %53, %61 : vector<2x32xf32>
    %70 = arith.addf %68, %69 : vector<2x32xf32>
    %71 = math.tanh %70 : vector<2x32xf32>
    %72 = arith.mulf %67, %71 : vector<2x32xf32>
    %73 = vector.extract_strided_slice %72 {offsets = [0, 0], sizes = [1, 32], strides = [1, 1]} : vector<2x32xf32> to vector<1x32xf32>
    %c1 = arith.constant 1 : index
    %c0_20 = arith.constant 0 : index
    %74 = vector.load %arg19[%c1, %c0_20] : memref<16x32xf32, #tpu.memory_space<vmem>>, vector<1x32xf32>
    tpu.vector_store %arg19[%c1, %c0_20], %73 {strides = array<i32>} : memref<16x32xf32, #tpu.memory_space<vmem>>, vector<1x32xf32>,
    %75 = vector.extract_strided_slice %72 {offsets = [1, 0], sizes = [1, 32], strides = [1, 1]} : vector<2x32xf32> to vector<1x32xf32>
    %c9 = arith.constant 9 : index
    %c0_21 = arith.constant 0 : index
    %76 = vector.load %arg19[%c9, %c0_21] : memref<16x32xf32, #tpu.memory_space<vmem>>, vector<1x32xf32>
    tpu.vector_store %arg19[%c9, %c0_21], %75 {strides = array<i32>} : memref<16x32xf32, #tpu.memory_space<vmem>>, vector<1x32xf32>,
    %77 = vector.extract_strided_slice %5 {offsets = [2, 0], sizes = [1, 128], strides = [1, 1]} : vector<16x128xf32> to vector<1x128xf32>
    %78 = vector.extract_strided_slice %5 {offsets = [10, 0], sizes = [1, 128], strides = [1, 1]} : vector<16x128xf32> to vector<1x128xf32>
    %79 = tpu.concatenate %77, %78 in 0 : vector<1x128xf32>, vector<1x128xf32> -> vector<2x128xf32>
    %cst_22 = arith.constant dense<0.000000e+00> : vector<2x128xf32>
    %80 = tpu.matmul %72, %6, %cst_22 {dimension_numbers = #tpu.dot_dimension_numbers<[1], [0], [0], [1], [0, 0, 1, 1], [], []>} : vector<2x32xf32>, vector<32x128xf32>, vector<2x128xf32> -> vector<2x128xf32>
    %81 = arith.addf %79, %80 : vector<2x128xf32>
    %82 = vector.extract_strided_slice %81 {offsets = [0, 0], sizes = [2, 32], strides = [1, 1]} : vector<2x128xf32> to vector<2x32xf32>
    %83 = arith.negf %82 : vector<2x32xf32>
    %84 = math.exp %83 : vector<2x32xf32>
    %cst_23 = arith.constant 1.000000e+00 : f32
    %85 = vector.broadcast %cst_23 : f32 to vector<2x32xf32>
    %86 = arith.addf %85, %84 : vector<2x32xf32>
    %87 = arith.divf %85, %86 : vector<2x32xf32>
    %88 = vector.extract_strided_slice %81 {offsets = [0, 32], sizes = [2, 32], strides = [1, 1]} : vector<2x128xf32> to vector<2x32xf32>
    %89 = arith.negf %88 : vector<2x32xf32>
    %90 = math.exp %89 : vector<2x32xf32>
    %cst_24 = arith.constant 1.000000e+00 : f32
    %91 = vector.broadcast %cst_24 : f32 to vector<2x32xf32>
    %92 = arith.addf %91, %90 : vector<2x32xf32>
    %93 = arith.divf %91, %92 : vector<2x32xf32>
    %94 = vector.extract_strided_slice %81 {offsets = [0, 64], sizes = [2, 32], strides = [1, 1]} : vector<2x128xf32> to vector<2x32xf32>
    %95 = math.tanh %94 : vector<2x32xf32>
    %96 = vector.extract_strided_slice %81 {offsets = [0, 96], sizes = [2, 32], strides = [1, 1]} : vector<2x128xf32> to vector<2x32xf32>
    %97 = arith.negf %96 : vector<2x32xf32>
    %98 = math.exp %97 : vector<2x32xf32>
    %cst_25 = arith.constant 1.000000e+00 : f32
    %99 = vector.broadcast %cst_25 : f32 to vector<2x32xf32>
    %100 = arith.addf %99, %98 : vector<2x32xf32>
    %101 = arith.divf %99, %100 : vector<2x32xf32>
    %102 = arith.mulf %93, %70 : vector<2x32xf32>
    %103 = arith.mulf %87, %95 : vector<2x32xf32>
    %104 = arith.addf %102, %103 : vector<2x32xf32>
    %105 = math.tanh %104 : vector<2x32xf32>
    %106 = arith.mulf %101, %105 : vector<2x32xf32>
    %107 = vector.extract_strided_slice %106 {offsets = [0, 0], sizes = [1, 32], strides = [1, 1]} : vector<2x32xf32> to vector<1x32xf32>
    %c2 = arith.constant 2 : index
    %c0_26 = arith.constant 0 : index
    %108 = vector.load %arg19[%c2, %c0_26] : memref<16x32xf32, #tpu.memory_space<vmem>>, vector<1x32xf32>
    tpu.vector_store %arg19[%c2, %c0_26], %107 {strides = array<i32>} : memref<16x32xf32, #tpu.memory_space<vmem>>, vector<1x32xf32>,
    %109 = vector.extract_strided_slice %106 {offsets = [1, 0], sizes = [1, 32], strides = [1, 1]} : vector<2x32xf32> to vector<1x32xf32>
    %c10 = arith.constant 10 : index
    %c0_27 = arith.constant 0 : index
    %110 = vector.load %arg19[%c10, %c0_27] : memref<16x32xf32, #tpu.memory_space<vmem>>, vector<1x32xf32>
    tpu.vector_store %arg19[%c10, %c0_27], %109 {strides = array<i32>} : memref<16x32xf32, #tpu.memory_space<vmem>>, vector<1x32xf32>,
    %111 = vector.extract_strided_slice %5 {offsets = [3, 0], sizes = [1, 128], strides = [1, 1]} : vector<16x128xf32> to vector<1x128xf32>
    %112 = vector.extract_strided_slice %5 {offsets = [11, 0], sizes = [1, 128], strides = [1, 1]} : vector<16x128xf32> to vector<1x128xf32>
    %113 = tpu.concatenate %111, %112 in 0 : vector<1x128xf32>, vector<1x128xf32> -> vector<2x128xf32>
    %cst_28 = arith.constant dense<0.000000e+00> : vector<2x128xf32>
    %114 = tpu.matmul %106, %6, %cst_28 {dimension_numbers = #tpu.dot_dimension_numbers<[1], [0], [0], [1], [0, 0, 1, 1], [], []>} : vector<2x32xf32>, vector<32x128xf32>, vector<2x128xf32> -> vector<2x128xf32>
    %115 = arith.addf %113, %114 : vector<2x128xf32>
    %116 = vector.extract_strided_slice %115 {offsets = [0, 0], sizes = [2, 32], strides = [1, 1]} : vector<2x128xf32> to vector<2x32xf32>
    %117 = arith.negf %116 : vector<2x32xf32>
    %118 = math.exp %117 : vector<2x32xf32>
    %cst_29 = arith.constant 1.000000e+00 : f32
    %119 = vector.broadcast %cst_29 : f32 to vector<2x32xf32>
    %120 = arith.addf %119, %118 : vector<2x32xf32>
    %121 = arith.divf %119, %120 : vector<2x32xf32>
    %122 = vector.extract_strided_slice %115 {offsets = [0, 32], sizes = [2, 32], strides = [1, 1]} : vector<2x128xf32> to vector<2x32xf32>
    %123 = arith.negf %122 : vector<2x32xf32>
    %124 = math.exp %123 : vector<2x32xf32>
    %cst_30 = arith.constant 1.000000e+00 : f32
    %125 = vector.broadcast %cst_30 : f32 to vector<2x32xf32>
    %126 = arith.addf %125, %124 : vector<2x32xf32>
    %127 = arith.divf %125, %126 : vector<2x32xf32>
    %128 = vector.extract_strided_slice %115 {offsets = [0, 64], sizes = [2, 32], strides = [1, 1]} : vector<2x128xf32> to vector<2x32xf32>
    %129 = math.tanh %128 : vector<2x32xf32>
    %130 = vector.extract_strided_slice %115 {offsets = [0, 96], sizes = [2, 32], strides = [1, 1]} : vector<2x128xf32> to vector<2x32xf32>
    %131 = arith.negf %130 : vector<2x32xf32>
    %132 = math.exp %131 : vector<2x32xf32>
    %cst_31 = arith.constant 1.000000e+00 : f32
    %133 = vector.broadcast %cst_31 : f32 to vector<2x32xf32>
    %134 = arith.addf %133, %132 : vector<2x32xf32>
    %135 = arith.divf %133, %134 : vector<2x32xf32>
    %136 = arith.mulf %127, %104 : vector<2x32xf32>
    %137 = arith.mulf %121, %129 : vector<2x32xf32>
    %138 = arith.addf %136, %137 : vector<2x32xf32>
    %139 = math.tanh %138 : vector<2x32xf32>
    %140 = arith.mulf %135, %139 : vector<2x32xf32>
    %141 = vector.extract_strided_slice %140 {offsets = [0, 0], sizes = [1, 32], strides = [1, 1]} : vector<2x32xf32> to vector<1x32xf32>
    %c3 = arith.constant 3 : index
    %c0_32 = arith.constant 0 : index
    %142 = vector.load %arg19[%c3, %c0_32] : memref<16x32xf32, #tpu.memory_space<vmem>>, vector<1x32xf32>
    tpu.vector_store %arg19[%c3, %c0_32], %141 {strides = array<i32>} : memref<16x32xf32, #tpu.memory_space<vmem>>, vector<1x32xf32>,
    %143 = vector.extract_strided_slice %140 {offsets = [1, 0], sizes = [1, 32], strides = [1, 1]} : vector<2x32xf32> to vector<1x32xf32>
    %c11 = arith.constant 11 : index
    %c0_33 = arith.constant 0 : index
    %144 = vector.load %arg19[%c11, %c0_33] : memref<16x32xf32, #tpu.memory_space<vmem>>, vector<1x32xf32>
    tpu.vector_store %arg19[%c11, %c0_33], %143 {strides = array<i32>} : memref<16x32xf32, #tpu.memory_space<vmem>>, vector<1x32xf32>,
    %145 = vector.extract_strided_slice %5 {offsets = [4, 0], sizes = [1, 128], strides = [1, 1]} : vector<16x128xf32> to vector<1x128xf32>
    %146 = vector.extract_strided_slice %5 {offsets = [12, 0], sizes = [1, 128], strides = [1, 1]} : vector<16x128xf32> to vector<1x128xf32>
    %147 = tpu.concatenate %145, %146 in 0 : vector<1x128xf32>, vector<1x128xf32> -> vector<2x128xf32>
    %cst_34 = arith.constant dense<0.000000e+00> : vector<2x128xf32>
    %148 = tpu.matmul %140, %6, %cst_34 {dimension_numbers = #tpu.dot_dimension_numbers<[1], [0], [0], [1], [0, 0, 1, 1], [], []>} : vector<2x32xf32>, vector<32x128xf32>, vector<2x128xf32> -> vector<2x128xf32>
    %149 = arith.addf %147, %148 : vector<2x128xf32>
    %150 = vector.extract_strided_slice %149 {offsets = [0, 0], sizes = [2, 32], strides = [1, 1]} : vector<2x128xf32> to vector<2x32xf32>
    %151 = arith.negf %150 : vector<2x32xf32>
    %152 = math.exp %151 : vector<2x32xf32>
    %cst_35 = arith.constant 1.000000e+00 : f32
    %153 = vector.broadcast %cst_35 : f32 to vector<2x32xf32>
    %154 = arith.addf %153, %152 : vector<2x32xf32>
    %155 = arith.divf %153, %154 : vector<2x32xf32>
    %156 = vector.extract_strided_slice %149 {offsets = [0, 32], sizes = [2, 32], strides = [1, 1]} : vector<2x128xf32> to vector<2x32xf32>
    %157 = arith.negf %156 : vector<2x32xf32>
    %158 = math.exp %157 : vector<2x32xf32>
    %cst_36 = arith.constant 1.000000e+00 : f32
    %159 = vector.broadcast %cst_36 : f32 to vector<2x32xf32>
    %160 = arith.addf %159, %158 : vector<2x32xf32>
    %161 = arith.divf %159, %160 : vector<2x32xf32>
    %162 = vector.extract_strided_slice %149 {offsets = [0, 64], sizes = [2, 32], strides = [1, 1]} : vector<2x128xf32> to vector<2x32xf32>
    %163 = math.tanh %162 : vector<2x32xf32>
    %164 = vector.extract_strided_slice %149 {offsets = [0, 96], sizes = [2, 32], strides = [1, 1]} : vector<2x128xf32> to vector<2x32xf32>
    %165 = arith.negf %164 : vector<2x32xf32>
    %166 = math.exp %165 : vector<2x32xf32>
    %cst_37 = arith.constant 1.000000e+00 : f32
    %167 = vector.broadcast %cst_37 : f32 to vector<2x32xf32>
    %168 = arith.addf %167, %166 : vector<2x32xf32>
    %169 = arith.divf %167, %168 : vector<2x32xf32>
    %170 = arith.mulf %161, %138 : vector<2x32xf32>
    %171 = arith.mulf %155, %163 : vector<2x32xf32>
    %172 = arith.addf %170, %171 : vector<2x32xf32>
    %173 = math.tanh %172 : vector<2x32xf32>
    %174 = arith.mulf %169, %173 : vector<2x32xf32>
    %175 = vector.extract_strided_slice %174 {offsets = [0, 0], sizes = [1, 32], strides = [1, 1]} : vector<2x32xf32> to vector<1x32xf32>
    %c4 = arith.constant 4 : index
    %c0_38 = arith.constant 0 : index
    %176 = vector.load %arg19[%c4, %c0_38] : memref<16x32xf32, #tpu.memory_space<vmem>>, vector<1x32xf32>
    tpu.vector_store %arg19[%c4, %c0_38], %175 {strides = array<i32>} : memref<16x32xf32, #tpu.memory_space<vmem>>, vector<1x32xf32>,
    %177 = vector.extract_strided_slice %174 {offsets = [1, 0], sizes = [1, 32], strides = [1, 1]} : vector<2x32xf32> to vector<1x32xf32>
    %c12 = arith.constant 12 : index
    %c0_39 = arith.constant 0 : index
    %178 = vector.load %arg19[%c12, %c0_39] : memref<16x32xf32, #tpu.memory_space<vmem>>, vector<1x32xf32>
    tpu.vector_store %arg19[%c12, %c0_39], %177 {strides = array<i32>} : memref<16x32xf32, #tpu.memory_space<vmem>>, vector<1x32xf32>,
    %179 = vector.extract_strided_slice %5 {offsets = [5, 0], sizes = [1, 128], strides = [1, 1]} : vector<16x128xf32> to vector<1x128xf32>
    %180 = vector.extract_strided_slice %5 {offsets = [13, 0], sizes = [1, 128], strides = [1, 1]} : vector<16x128xf32> to vector<1x128xf32>
    %181 = tpu.concatenate %179, %180 in 0 : vector<1x128xf32>, vector<1x128xf32> -> vector<2x128xf32>
    %cst_40 = arith.constant dense<0.000000e+00> : vector<2x128xf32>
    %182 = tpu.matmul %174, %6, %cst_40 {dimension_numbers = #tpu.dot_dimension_numbers<[1], [0], [0], [1], [0, 0, 1, 1], [], []>} : vector<2x32xf32>, vector<32x128xf32>, vector<2x128xf32> -> vector<2x128xf32>
    %183 = arith.addf %181, %182 : vector<2x128xf32>
    %184 = vector.extract_strided_slice %183 {offsets = [0, 0], sizes = [2, 32], strides = [1, 1]} : vector<2x128xf32> to vector<2x32xf32>
    %185 = arith.negf %184 : vector<2x32xf32>
    %186 = math.exp %185 : vector<2x32xf32>
    %cst_41 = arith.constant 1.000000e+00 : f32
    %187 = vector.broadcast %cst_41 : f32 to vector<2x32xf32>
    %188 = arith.addf %187, %186 : vector<2x32xf32>
    %189 = arith.divf %187, %188 : vector<2x32xf32>
    %190 = vector.extract_strided_slice %183 {offsets = [0, 32], sizes = [2, 32], strides = [1, 1]} : vector<2x128xf32> to vector<2x32xf32>
    %191 = arith.negf %190 : vector<2x32xf32>
    %192 = math.exp %191 : vector<2x32xf32>
    %cst_42 = arith.constant 1.000000e+00 : f32
    %193 = vector.broadcast %cst_42 : f32 to vector<2x32xf32>
    %194 = arith.addf %193, %192 : vector<2x32xf32>
    %195 = arith.divf %193, %194 : vector<2x32xf32>
    %196 = vector.extract_strided_slice %183 {offsets = [0, 64], sizes = [2, 32], strides = [1, 1]} : vector<2x128xf32> to vector<2x32xf32>
    %197 = math.tanh %196 : vector<2x32xf32>
    %198 = vector.extract_strided_slice %183 {offsets = [0, 96], sizes = [2, 32], strides = [1, 1]} : vector<2x128xf32> to vector<2x32xf32>
    %199 = arith.negf %198 : vector<2x32xf32>
    %200 = math.exp %199 : vector<2x32xf32>
    %cst_43 = arith.constant 1.000000e+00 : f32
    %201 = vector.broadcast %cst_43 : f32 to vector<2x32xf32>
    %202 = arith.addf %201, %200 : vector<2x32xf32>
    %203 = arith.divf %201, %202 : vector<2x32xf32>
    %204 = arith.mulf %195, %172 : vector<2x32xf32>
    %205 = arith.mulf %189, %197 : vector<2x32xf32>
    %206 = arith.addf %204, %205 : vector<2x32xf32>
    %207 = math.tanh %206 : vector<2x32xf32>
    %208 = arith.mulf %203, %207 : vector<2x32xf32>
    %209 = vector.extract_strided_slice %208 {offsets = [0, 0], sizes = [1, 32], strides = [1, 1]} : vector<2x32xf32> to vector<1x32xf32>
    %c5 = arith.constant 5 : index
    %c0_44 = arith.constant 0 : index
    %210 = vector.load %arg19[%c5, %c0_44] : memref<16x32xf32, #tpu.memory_space<vmem>>, vector<1x32xf32>
    tpu.vector_store %arg19[%c5, %c0_44], %209 {strides = array<i32>} : memref<16x32xf32, #tpu.memory_space<vmem>>, vector<1x32xf32>,
    %211 = vector.extract_strided_slice %208 {offsets = [1, 0], sizes = [1, 32], strides = [1, 1]} : vector<2x32xf32> to vector<1x32xf32>
    %c13 = arith.constant 13 : index
    %c0_45 = arith.constant 0 : index
    %212 = vector.load %arg19[%c13, %c0_45] : memref<16x32xf32, #tpu.memory_space<vmem>>, vector<1x32xf32>
    tpu.vector_store %arg19[%c13, %c0_45], %211 {strides = array<i32>} : memref<16x32xf32, #tpu.memory_space<vmem>>, vector<1x32xf32>,
    %213 = vector.extract_strided_slice %5 {offsets = [6, 0], sizes = [1, 128], strides = [1, 1]} : vector<16x128xf32> to vector<1x128xf32>
    %214 = vector.extract_strided_slice %5 {offsets = [14, 0], sizes = [1, 128], strides = [1, 1]} : vector<16x128xf32> to vector<1x128xf32>
    %215 = tpu.concatenate %213, %214 in 0 : vector<1x128xf32>, vector<1x128xf32> -> vector<2x128xf32>
    %cst_46 = arith.constant dense<0.000000e+00> : vector<2x128xf32>
    %216 = tpu.matmul %208, %6, %cst_46 {dimension_numbers = #tpu.dot_dimension_numbers<[1], [0], [0], [1], [0, 0, 1, 1], [], []>} : vector<2x32xf32>, vector<32x128xf32>, vector<2x128xf32> -> vector<2x128xf32>
    %217 = arith.addf %215, %216 : vector<2x128xf32>
    %218 = vector.extract_strided_slice %217 {offsets = [0, 0], sizes = [2, 32], strides = [1, 1]} : vector<2x128xf32> to vector<2x32xf32>
    %219 = arith.negf %218 : vector<2x32xf32>
    %220 = math.exp %219 : vector<2x32xf32>
    %cst_47 = arith.constant 1.000000e+00 : f32
    %221 = vector.broadcast %cst_47 : f32 to vector<2x32xf32>
    %222 = arith.addf %221, %220 : vector<2x32xf32>
    %223 = arith.divf %221, %222 : vector<2x32xf32>
    %224 = vector.extract_strided_slice %217 {offsets = [0, 32], sizes = [2, 32], strides = [1, 1]} : vector<2x128xf32> to vector<2x32xf32>
    %225 = arith.negf %224 : vector<2x32xf32>
    %226 = math.exp %225 : vector<2x32xf32>
    %cst_48 = arith.constant 1.000000e+00 : f32
    %227 = vector.broadcast %cst_48 : f32 to vector<2x32xf32>
    %228 = arith.addf %227, %226 : vector<2x32xf32>
    %229 = arith.divf %227, %228 : vector<2x32xf32>
    %230 = vector.extract_strided_slice %217 {offsets = [0, 64], sizes = [2, 32], strides = [1, 1]} : vector<2x128xf32> to vector<2x32xf32>
    %231 = math.tanh %230 : vector<2x32xf32>
    %232 = vector.extract_strided_slice %217 {offsets = [0, 96], sizes = [2, 32], strides = [1, 1]} : vector<2x128xf32> to vector<2x32xf32>
    %233 = arith.negf %232 : vector<2x32xf32>
    %234 = math.exp %233 : vector<2x32xf32>
    %cst_49 = arith.constant 1.000000e+00 : f32
    %235 = vector.broadcast %cst_49 : f32 to vector<2x32xf32>
    %236 = arith.addf %235, %234 : vector<2x32xf32>
    %237 = arith.divf %235, %236 : vector<2x32xf32>
    %238 = arith.mulf %229, %206 : vector<2x32xf32>
    %239 = arith.mulf %223, %231 : vector<2x32xf32>
    %240 = arith.addf %238, %239 : vector<2x32xf32>
    %241 = math.tanh %240 : vector<2x32xf32>
    %242 = arith.mulf %237, %241 : vector<2x32xf32>
    %243 = vector.extract_strided_slice %242 {offsets = [0, 0], sizes = [1, 32], strides = [1, 1]} : vector<2x32xf32> to vector<1x32xf32>
    %c6 = arith.constant 6 : index
    %c0_50 = arith.constant 0 : index
    %244 = vector.load %arg19[%c6, %c0_50] : memref<16x32xf32, #tpu.memory_space<vmem>>, vector<1x32xf32>
    tpu.vector_store %arg19[%c6, %c0_50], %243 {strides = array<i32>} : memref<16x32xf32, #tpu.memory_space<vmem>>, vector<1x32xf32>,
    %245 = vector.extract_strided_slice %242 {offsets = [1, 0], sizes = [1, 32], strides = [1, 1]} : vector<2x32xf32> to vector<1x32xf32>
    %c14 = arith.constant 14 : index
    %c0_51 = arith.constant 0 : index
    %246 = vector.load %arg19[%c14, %c0_51] : memref<16x32xf32, #tpu.memory_space<vmem>>, vector<1x32xf32>
    tpu.vector_store %arg19[%c14, %c0_51], %245 {strides = array<i32>} : memref<16x32xf32, #tpu.memory_space<vmem>>, vector<1x32xf32>,
    %247 = vector.extract_strided_slice %5 {offsets = [7, 0], sizes = [1, 128], strides = [1, 1]} : vector<16x128xf32> to vector<1x128xf32>
    %248 = vector.extract_strided_slice %5 {offsets = [15, 0], sizes = [1, 128], strides = [1, 1]} : vector<16x128xf32> to vector<1x128xf32>
    %249 = tpu.concatenate %247, %248 in 0 : vector<1x128xf32>, vector<1x128xf32> -> vector<2x128xf32>
    %cst_52 = arith.constant dense<0.000000e+00> : vector<2x128xf32>
    %250 = tpu.matmul %242, %6, %cst_52 {dimension_numbers = #tpu.dot_dimension_numbers<[1], [0], [0], [1], [0, 0, 1, 1], [], []>} : vector<2x32xf32>, vector<32x128xf32>, vector<2x128xf32> -> vector<2x128xf32>
    %251 = arith.addf %249, %250 : vector<2x128xf32>
    %252 = vector.extract_strided_slice %251 {offsets = [0, 0], sizes = [2, 32], strides = [1, 1]} : vector<2x128xf32> to vector<2x32xf32>
    %253 = arith.negf %252 : vector<2x32xf32>
    %254 = math.exp %253 : vector<2x32xf32>
    %cst_53 = arith.constant 1.000000e+00 : f32
    %255 = vector.broadcast %cst_53 : f32 to vector<2x32xf32>
    %256 = arith.addf %255, %254 : vector<2x32xf32>
    %257 = arith.divf %255, %256 : vector<2x32xf32>
    %258 = vector.extract_strided_slice %251 {offsets = [0, 32], sizes = [2, 32], strides = [1, 1]} : vector<2x128xf32> to vector<2x32xf32>
    %259 = arith.negf %258 : vector<2x32xf32>
    %260 = math.exp %259 : vector<2x32xf32>
    %cst_54 = arith.constant 1.000000e+00 : f32
    %261 = vector.broadcast %cst_54 : f32 to vector<2x32xf32>
    %262 = arith.addf %261, %260 : vector<2x32xf32>
    %263 = arith.divf %261, %262 : vector<2x32xf32>
    %264 = vector.extract_strided_slice %251 {offsets = [0, 64], sizes = [2, 32], strides = [1, 1]} : vector<2x128xf32> to vector<2x32xf32>
    %265 = math.tanh %264 : vector<2x32xf32>
    %266 = vector.extract_strided_slice %251 {offsets = [0, 96], sizes = [2, 32], strides = [1, 1]} : vector<2x128xf32> to vector<2x32xf32>
    %267 = arith.negf %266 : vector<2x32xf32>
    %268 = math.exp %267 : vector<2x32xf32>
    %cst_55 = arith.constant 1.000000e+00 : f32
    %269 = vector.broadcast %cst_55 : f32 to vector<2x32xf32>
    %270 = arith.addf %269, %268 : vector<2x32xf32>
    %271 = arith.divf %269, %270 : vector<2x32xf32>
    %272 = arith.mulf %263, %240 : vector<2x32xf32>
    %273 = arith.mulf %257, %265 : vector<2x32xf32>
    %274 = arith.addf %272, %273 : vector<2x32xf32>
    %275 = math.tanh %274 : vector<2x32xf32>
    %276 = arith.mulf %271, %275 : vector<2x32xf32>
    %277 = vector.extract_strided_slice %276 {offsets = [0, 0], sizes = [1, 32], strides = [1, 1]} : vector<2x32xf32> to vector<1x32xf32>
    %c7 = arith.constant 7 : index
    %c0_56 = arith.constant 0 : index
    %278 = vector.load %arg19[%c7, %c0_56] : memref<16x32xf32, #tpu.memory_space<vmem>>, vector<1x32xf32>
    tpu.vector_store %arg19[%c7, %c0_56], %277 {strides = array<i32>} : memref<16x32xf32, #tpu.memory_space<vmem>>, vector<1x32xf32>,
    %279 = vector.extract_strided_slice %276 {offsets = [1, 0], sizes = [1, 32], strides = [1, 1]} : vector<2x32xf32> to vector<1x32xf32>
    %c15 = arith.constant 15 : index
    %c0_57 = arith.constant 0 : index
    %280 = vector.load %arg19[%c15, %c0_57] : memref<16x32xf32, #tpu.memory_space<vmem>>, vector<1x32xf32>
    tpu.vector_store %arg19[%c15, %c0_57], %279 {strides = array<i32>} : memref<16x32xf32, #tpu.memory_space<vmem>>, vector<1x32xf32>,
    %c0_58 = arith.constant 0 : index
    %c0_59 = arith.constant 0 : index
    %281 = vector.load %arg17[%c0_58, %c0_59] : memref<2x32xf32, #tpu.memory_space<vmem>>, vector<2x32xf32>
    tpu.vector_store %arg17[%c0_58, %c0_59], %276 {strides = array<i32>} : memref<2x32xf32, #tpu.memory_space<vmem>>, vector<2x32xf32>,
    %c0_60 = arith.constant 0 : index
    %c0_61 = arith.constant 0 : index
    %282 = vector.load %arg18[%c0_60, %c0_61] : memref<2x32xf32, #tpu.memory_space<vmem>>, vector<2x32xf32>
    tpu.vector_store %arg18[%c0_60, %c0_61], %274 {strides = array<i32>} : memref<2x32xf32, #tpu.memory_space<vmem>>, vector<2x32xf32>,
    %c0_62 = arith.constant 0 : index
    %c0_63 = arith.constant 0 : index
    %283 = vector.load %arg19[%c0_62, %c0_63] : memref<16x32xf32, #tpu.memory_space<vmem>>, vector<16x32xf32>
    %c0_64 = arith.constant 0 : index
    %c0_65 = arith.constant 0 : index
    %284 = vector.load %arg1[%c0_64, %c0_65] : memref<16x4xf32, #tpu.memory_space<vmem>>, vector<16x4xf32>
    %c0_66 = arith.constant 0 : index
    %c0_67 = arith.constant 0 : index
    %285 = vector.load %arg5[%c0_66, %c0_67] : memref<32x16xf32, #tpu.memory_space<vmem>>, vector<32x16xf32>
    %cst_68 = arith.constant dense<0.000000e+00> : vector<16x16xf32>
    %286 = tpu.matmul %283, %285, %cst_68 {dimension_numbers = #tpu.dot_dimension_numbers<[1], [0], [0], [1], [0, 0, 1, 1], [], []>} : vector<16x32xf32>, vector<32x16xf32>, vector<16x16xf32> -> vector<16x16xf32>
    %c0_69 = arith.constant 0 : index
    %c0_70 = arith.constant 0 : index
    %287 = vector.load %arg6[%c0_69, %c0_70] : memref<1x16xf32, #tpu.memory_space<vmem>>, vector<1x16xf32>
    %288 = vector.broadcast %287 : vector<1x16xf32> to vector<16x16xf32>
    %289 = arith.addf %286, %288 : vector<16x16xf32>
    %cst_71 = arith.constant 0.000000e+00 : f32
    %290 = vector.broadcast %cst_71 : f32 to vector<16x16xf32>
    %291 = arith.cmpf ogt, %289, %290 : vector<16x16xf32>
    %cst_72 = arith.constant 0.000000e+00 : f32
    %292 = vector.broadcast %cst_72 : f32 to vector<16x16xf32>
    %293 = arith.minimumf %289, %292 : vector<16x16xf32>
    %294 = math.exp %293 : vector<16x16xf32>
    %cst_73 = arith.constant 1.000000e+00 : f32
    %295 = vector.broadcast %cst_73 : f32 to vector<16x16xf32>
    %296 = arith.subf %294, %295 : vector<16x16xf32>
    %297 = arith.select %291, %289, %296 : vector<16x16xi1>, vector<16x16xf32>
    %c0_74 = arith.constant 0 : index
    %c0_75 = arith.constant 0 : index
    %298 = vector.load %arg7[%c0_74, %c0_75] : memref<16x32xf32, #tpu.memory_space<vmem>>, vector<16x32xf32>
    %cst_76 = arith.constant dense<0.000000e+00> : vector<16x32xf32>
    %299 = tpu.matmul %297, %298, %cst_76 {dimension_numbers = #tpu.dot_dimension_numbers<[1], [0], [0], [1], [0, 0, 1, 1], [], []>} : vector<16x16xf32>, vector<16x32xf32>, vector<16x32xf32> -> vector<16x32xf32>
    %c0_77 = arith.constant 0 : index
    %c0_78 = arith.constant 0 : index
    %300 = vector.load %arg8[%c0_77, %c0_78] : memref<1x32xf32, #tpu.memory_space<vmem>>, vector<1x32xf32>
    %301 = vector.broadcast %300 : vector<1x32xf32> to vector<16x32xf32>
    %302 = arith.addf %299, %301 : vector<16x32xf32>
    %cst_79 = arith.constant 0.000000e+00 : f32
    %303 = vector.broadcast %cst_79 : f32 to vector<16x32xf32>
    %304 = arith.cmpf ogt, %302, %303 : vector<16x32xf32>
    %cst_80 = arith.constant 0.000000e+00 : f32
    %305 = vector.broadcast %cst_80 : f32 to vector<16x32xf32>
    %306 = arith.minimumf %302, %305 : vector<16x32xf32>
    %307 = math.exp %306 : vector<16x32xf32>
    %cst_81 = arith.constant 1.000000e+00 : f32
    %308 = vector.broadcast %cst_81 : f32 to vector<16x32xf32>
    %309 = arith.subf %307, %308 : vector<16x32xf32>
    %310 = arith.select %304, %302, %309 : vector<16x32xi1>, vector<16x32xf32>
    %c0_82 = arith.constant 0 : index
    %c0_83 = arith.constant 0 : index
    %311 = vector.load %arg9[%c0_82, %c0_83] : memref<32x4xf32, #tpu.memory_space<vmem>>, vector<32x4xf32>
    %cst_84 = arith.constant dense<0.000000e+00> : vector<16x4xf32>
    %312 = tpu.matmul %310, %311, %cst_84 {dimension_numbers = #tpu.dot_dimension_numbers<[1], [0], [0], [1], [0, 0, 1, 1], [], []>} : vector<16x32xf32>, vector<32x4xf32>, vector<16x4xf32> -> vector<16x4xf32>
    %c0_85 = arith.constant 0 : index
    %c0_86 = arith.constant 0 : index
    %313 = vector.load %arg10[%c0_85, %c0_86] : memref<1x4xf32, #tpu.memory_space<vmem>>, vector<1x4xf32>
    %314 = vector.broadcast %313 : vector<1x4xf32> to vector<16x4xf32>
    %315 = arith.addf %312, %314 : vector<16x4xf32>
    %cst_87 = arith.constant dense<0xFF800000> : vector<16xf32>
    %316 = vector.multi_reduction <maximumf>, %315, %cst_87 [1] : vector<16x4xf32> to vector<16xf32>
    %317 = vector.shape_cast %316 : vector<16xf32> to vector<16x1xf32>
    %318 = vector.broadcast %317 : vector<16x1xf32> to vector<16x4xf32>
    %319 = arith.subf %315, %318 : vector<16x4xf32>
    %320 = math.exp %319 : vector<16x4xf32>
    %cst_88 = arith.constant dense<0.000000e+00> : vector<16xf32>
    %321 = vector.multi_reduction <add>, %320, %cst_88 [1] : vector<16x4xf32> to vector<16xf32>
    %322 = vector.shape_cast %321 : vector<16xf32> to vector<16x1xf32>
    %323 = tpu.reciprocal %322 : vector<16x1xf32> -> vector<16x1xf32>
    %324 = vector.broadcast %323 : vector<16x1xf32> to vector<16x4xf32>
    %325 = arith.mulf %320, %324 : vector<16x4xf32>
    %c0_89 = arith.constant 0 : index
    %c0_90 = arith.constant 0 : index
    %326 = vector.load %arg11[%c0_89, %c0_90] : memref<16x32xf32, #tpu.memory_space<vmem>>, vector<16x32xf32>
    %cst_91 = arith.constant dense<0.000000e+00> : vector<16x32xf32>
    %327 = tpu.matmul %297, %326, %cst_91 {dimension_numbers = #tpu.dot_dimension_numbers<[1], [0], [0], [1], [0, 0, 1, 1], [], []>} : vector<16x16xf32>, vector<16x32xf32>, vector<16x32xf32> -> vector<16x32xf32>
    %c0_92 = arith.constant 0 : index
    %c0_93 = arith.constant 0 : index
    %328 = vector.load %arg12[%c0_92, %c0_93] : memref<4x32xf32, #tpu.memory_space<vmem>>, vector<4x32xf32>
    %cst_94 = arith.constant dense<0.000000e+00> : vector<16x32xf32>
    %329 = tpu.matmul %284, %328, %cst_94 {dimension_numbers = #tpu.dot_dimension_numbers<[1], [0], [0], [1], [0, 0, 1, 1], [], []>} : vector<16x4xf32>, vector<4x32xf32>, vector<16x32xf32> -> vector<16x32xf32>
    %330 = arith.addf %327, %329 : vector<16x32xf32>
    %c0_95 = arith.constant 0 : index
    %c0_96 = arith.constant 0 : index
    %331 = vector.load %arg13[%c0_95, %c0_96] : memref<1x32xf32, #tpu.memory_space<vmem>>, vector<1x32xf32>
    %332 = vector.broadcast %331 : vector<1x32xf32> to vector<16x32xf32>
    %333 = arith.addf %330, %332 : vector<16x32xf32>
    %cst_97 = arith.constant 0.000000e+00 : f32
    %334 = vector.broadcast %cst_97 : f32 to vector<16x32xf32>
    %335 = arith.cmpf ogt, %333, %334 : vector<16x32xf32>
    %cst_98 = arith.constant 0.000000e+00 : f32
    %336 = vector.broadcast %cst_98 : f32 to vector<16x32xf32>
    %337 = arith.minimumf %333, %336 : vector<16x32xf32>
    %338 = math.exp %337 : vector<16x32xf32>
    %cst_99 = arith.constant 1.000000e+00 : f32
    %339 = vector.broadcast %cst_99 : f32 to vector<16x32xf32>
    %340 = arith.subf %338, %339 : vector<16x32xf32>
    %341 = arith.select %335, %333, %340 : vector<16x32xi1>, vector<16x32xf32>
    %c0_100 = arith.constant 0 : index
    %c0_101 = arith.constant 0 : index
    %342 = vector.load %arg14[%c0_100, %c0_101] : memref<32x2xf32, #tpu.memory_space<vmem>>, vector<32x2xf32>
    %cst_102 = arith.constant dense<0.000000e+00> : vector<16x2xf32>
    %343 = tpu.matmul %341, %342, %cst_102 {dimension_numbers = #tpu.dot_dimension_numbers<[1], [0], [0], [1], [0, 0, 1, 1], [], []>} : vector<16x32xf32>, vector<32x2xf32>, vector<16x2xf32> -> vector<16x2xf32>
    %c0_103 = arith.constant 0 : index
    %c0_104 = arith.constant 0 : index
    %344 = vector.load %arg15[%c0_103, %c0_104] : memref<1x2xf32, #tpu.memory_space<vmem>>, vector<1x2xf32>
    %345 = vector.broadcast %344 : vector<1x2xf32> to vector<16x2xf32>
    %346 = arith.addf %343, %345 : vector<16x2xf32>
    %cst_105 = arith.constant 0.000000e+00 : f32
    %347 = vector.broadcast %cst_105 : f32 to vector<16x106xf32>
    %348 = tpu.concatenate %297, %325, %346, %347 in 1 : vector<16x16xf32>, vector<16x4xf32>, vector<16x2xf32>, vector<16x106xf32> -> vector<16x128xf32>
    %c0_106 = arith.constant 0 : index
    %c0_107 = arith.constant 0 : index
    %349 = vector.load %arg16[%c0_106, %c0_107] : memref<16x128xf32, #tpu.memory_space<vmem>>, vector<16x128xf32>
    tpu.vector_store %arg16[%c0_106, %c0_107], %348 {strides = array<i32>} : memref<16x128xf32, #tpu.memory_space<vmem>>, vector<16x128xf32>,
    return
  }
}

</mosaic_0001>

<llo_original>
// kernel: tpu_custom_call.1
$region0: #{tpu_custom_call.1}
  #allocation0 [shape = 'u32[]', space=smem, size = 0x4, offset = 0x4, fixed_abs, tag = 'smem constant byte address 0x4 - core index']
  #allocation1 [shape = 'u32[144,128]{1,0:T(1,128)}', space=vmem, size = 0x12000, scoped, tag = 'internal scratch']
  #allocation2 [shape = 'f32[16,32]{1,0:T(8,128)}', space=vmem, size = 0x2000, scoped, tag = 'scratch operand']
  %s0 = inlined_call_operand.vmem [shape: f32[16,8], index: 0, kind: input, shape index: {}]
  %s1 = inlined_call_operand.vmem [shape: f32[16,4], index: 1, kind: input, shape index: {}]
  %s2 = inlined_call_operand.vmem [shape: f32[8,128], index: 2, kind: input, shape index: {}]
  %s3 = inlined_call_operand.vmem [shape: f32[32,128], index: 3, kind: input, shape index: {}]
  %s4 = inlined_call_operand.vmem [shape: f32[1,128], index: 4, kind: input, shape index: {}]
  %s5 = inlined_call_operand.vmem [shape: f32[32,16], index: 5, kind: input, shape index: {}]
  %s6 = inlined_call_operand.vmem [shape: f32[1,16], index: 6, kind: input, shape index: {}]
  %s7 = inlined_call_operand.vmem [shape: f32[16,32], index: 7, kind: input, shape index: {}]
  %s8 = inlined_call_operand.vmem [shape: f32[1,32], index: 8, kind: input, shape index: {}]
  %s9 = inlined_call_operand.vmem [shape: f32[32,4], index: 9, kind: input, shape index: {}]
  %s10 = inlined_call_operand.vmem [shape: f32[1,4], index: 10, kind: input, shape index: {}]
  %s11 = inlined_call_operand.vmem [shape: f32[16,32], index: 11, kind: input, shape index: {}]
  %s12 = inlined_call_operand.vmem [shape: f32[4,32], index: 12, kind: input, shape index: {}]
  %s13 = inlined_call_operand.vmem [shape: f32[1,32], index: 13, kind: input, shape index: {}]
  %s14 = inlined_call_operand.vmem [shape: f32[32,2], index: 14, kind: input, shape index: {}]
  %s15 = inlined_call_operand.vmem [shape: f32[1,2], index: 15, kind: input, shape index: {}]
  %s16 = inlined_call_operand.hbm [shape: f32[16,128], index: 16, kind: output, shape index: {0}]
  %s17 = inlined_call_operand.hbm [shape: f32[2,32], index: 17, kind: output, shape index: {1}]
  %s18 = inlined_call_operand.hbm [shape: f32[2,32], index: 18, kind: output, shape index: {2}]
  %19 = xla_tuple %s16, %s17, %s18
  %s20 = sld [smem:[#allocation0]]
  $region90: #{tpu_custom_call.1} parent=0
    _
  %s22 = ssub.s32 1, %s20
  %s23 = scalar_select 0, %s22, %s20
  $region1: #{tpu_custom_call.1} parent=0
    #allocation3 [shape = 'u8[8192]{0}', space=vmem, size = 0x2000, scoped, tag = 'output window, operand 0, single buffered']
    #allocation4 [shape = 's32[1]{0}', space=sflag, size = 0x4, scoped, tag = 'scoped memory for tpu_custom_call.1']
    #allocation5 [shape = 'u8[1024]{0}', space=vmem, size = 0x400, scoped, tag = 'output window, operand 1, single buffered']
    #allocation6 [shape = 's32[1]{0}', space=sflag, size = 0x4, scoped, tag = 'scoped memory for tpu_custom_call.1']
    #allocation7 [shape = 'u8[1024]{0}', space=vmem, size = 0x400, scoped, tag = 'output window, operand 2, single buffered']
    %24 = vsyncpa [#allocation4], 0
    %25 = vsyncpa [#allocation6], 0
    // Predicated region
    $region2: #{tpu_custom_call.1} parent=1 // pred_check
      _
    $region3: #{tpu_custom_call.1} parent=1 // pred_check_branch
      %27 = sbr.rel (0) target = $region5
    $region4: #{tpu_custom_call.1} parent=1 // pred_region
      _
    $region5: #{tpu_custom_call.1} parent=1 // pred_fallthru
      _
    // Predicated region
    $region6: #{tpu_custom_call.1} parent=1 // pred_check
      _
    $region7: #{tpu_custom_call.1} parent=1 // pred_check_branch
      %29 = sbr.rel (0) target = $region9
    $region8: #{tpu_custom_call.1} parent=1 // pred_region
      _
    $region9: #{tpu_custom_call.1} parent=1 // pred_fallthru
      _
    // Predicated region
    $region10: #{tpu_custom_call.1} parent=1 // pred_check
      _
    $region11: #{tpu_custom_call.1} parent=1 // pred_check_branch
      %31 = sbr.rel (0) target = $region13
    $region12: #{tpu_custom_call.1} parent=1 // pred_region
      _
    $region13: #{tpu_custom_call.1} parent=1 // pred_fallthru
      _
    // Predicated region
    $region14: #{tpu_custom_call.1} parent=1 // pred_check
      _
    $region15: #{tpu_custom_call.1} parent=1 // pred_check_branch
      %33 = sbr.rel (0) target = $region17
    $region16: #{tpu_custom_call.1} parent=1 // pred_region
      _
    $region17: #{tpu_custom_call.1} parent=1 // pred_fallthru
      _
    // Predicated region
    $region18: #{tpu_custom_call.1} parent=1 // pred_check
      _
    $region19: #{tpu_custom_call.1} parent=1 // pred_check_branch
      %35 = sbr.rel (0) target = $region21
    $region20: #{tpu_custom_call.1} parent=1 // pred_region
      _
    $region21: #{tpu_custom_call.1} parent=1 // pred_fallthru
      _
    // Predicated region
    $region22: #{tpu_custom_call.1} parent=1 // pred_check
      _
    $region23: #{tpu_custom_call.1} parent=1 // pred_check_branch
      %37 = sbr.rel (0) target = $region25
    $region24: #{tpu_custom_call.1} parent=1 // pred_region
      _
    $region25: #{tpu_custom_call.1} parent=1 // pred_fallthru
      _
    // Predicated region
    $region26: #{tpu_custom_call.1} parent=1 // pred_check
      _
    $region27: #{tpu_custom_call.1} parent=1 // pred_check_branch
      %39 = sbr.rel (0) target = $region29
    $region28: #{tpu_custom_call.1} parent=1 // pred_region
      _
    $region29: #{tpu_custom_call.1} parent=1 // pred_fallthru
      _
    // Predicated region
    $region30: #{tpu_custom_call.1} parent=1 // pred_check
      _
    $region31: #{tpu_custom_call.1} parent=1 // pred_check_branch
      %41 = sbr.rel (0) target = $region33
    $region32: #{tpu_custom_call.1} parent=1 // pred_region
      _
    $region33: #{tpu_custom_call.1} parent=1 // pred_fallthru
      _
    // Predicated region
    $region34: #{tpu_custom_call.1} parent=1 // pred_check
      _
    $region35: #{tpu_custom_call.1} parent=1 // pred_check_branch
      %43 = sbr.rel (0) target = $region37
    $region36: #{tpu_custom_call.1} parent=1 // pred_region
      _
    $region37: #{tpu_custom_call.1} parent=1 // pred_fallthru
      _
    // Predicated region
    $region38: #{tpu_custom_call.1} parent=1 // pred_check
      _
    $region39: #{tpu_custom_call.1} parent=1 // pred_check_branch
      %45 = sbr.rel (0) target = $region41
    $region40: #{tpu_custom_call.1} parent=1 // pred_region
      _
    $region41: #{tpu_custom_call.1} parent=1 // pred_fallthru
      _
    // Predicated region
    $region42: #{tpu_custom_call.1} parent=1 // pred_check
      _
    $region43: #{tpu_custom_call.1} parent=1 // pred_check_branch
      %47 = sbr.rel (0) target = $region45
    $region44: #{tpu_custom_call.1} parent=1 // pred_region
      _
    $region45: #{tpu_custom_call.1} parent=1 // pred_fallthru
      _
    // Predicated region
    $region46: #{tpu_custom_call.1} parent=1 // pred_check
      _
    $region47: #{tpu_custom_call.1} parent=1 // pred_check_branch
      %49 = sbr.rel (0) target = $region49
    $region48: #{tpu_custom_call.1} parent=1 // pred_region
      _
    $region49: #{tpu_custom_call.1} parent=1 // pred_fallthru
      _
    // Predicated region
    $region50: #{tpu_custom_call.1} parent=1 // pred_check
      _
    $region51: #{tpu_custom_call.1} parent=1 // pred_check_branch
      %51 = sbr.rel (0) target = $region53
    $region52: #{tpu_custom_call.1} parent=1 // pred_region
      _
    $region53: #{tpu_custom_call.1} parent=1 // pred_fallthru
      _
    // Predicated region
    $region54: #{tpu_custom_call.1} parent=1 // pred_check
      _
    $region55: #{tpu_custom_call.1} parent=1 // pred_check_branch
      %53 = sbr.rel (0) target = $region57
    $region56: #{tpu_custom_call.1} parent=1 // pred_region
      _
    $region57: #{tpu_custom_call.1} parent=1 // pred_fallthru
      _
    // Predicated region
    $region58: #{tpu_custom_call.1} parent=1 // pred_check
      _
    $region59: #{tpu_custom_call.1} parent=1 // pred_check_branch
      %55 = sbr.rel (0) target = $region61
    $region60: #{tpu_custom_call.1} parent=1 // pred_region
      _
    $region61: #{tpu_custom_call.1} parent=1 // pred_fallthru
      _
    // Predicated region
    $region62: #{tpu_custom_call.1} parent=1 // pred_check
      _
    $region63: #{tpu_custom_call.1} parent=1 // pred_check_branch
      %57 = sbr.rel (0) target = $region65
    $region64: #{tpu_custom_call.1} parent=1 // pred_region
      _
    $region65: #{tpu_custom_call.1} parent=1 // pred_fallthru
      _
    %v58 = vld [vmem:[%s0] sm:$0xff]
    %v59 = vld [vmem:[%s0 + $0x8] sm:$0xff]
    %v60 = vld [vmem:[%s2] sm:$0xff]
    %v61 = vld [vmem:[%s4] sm:$0x1]
    %v63 = vlaneseq
    %v64 = vshrl.u32 %v63, 7
    %v65 = vsub.s32 0, %v64
    %v66 = vrot.slane %v61, %v65
    %vm68 = vcmask 64512
    %v70 = vsel %vm68, %v58, 0
    %v73 = vsel %vm68, %v59, 0
    %75 = vmatprep.subr.mxu0 0.0
    %76 = vmatpush1.msra.mxu0 0.0
    %77 = vmatprep.subr.mxu0 0.0
    %78 = vmatpush1.msra.mxu0 0.0
    %79 = vmatprep.subr.mxu0 0.0
    %80 = vmatpush1.msra.mxu0 0.0
    %81 = vmatprep.subr.mxu0 0.0
    %82 = vmatpush1.msra.mxu0 0.0
    %83 = vmatprep.subr.mxu0 0.0
    %84 = vmatpush1.msra.mxu0 0.0
    %85 = vmatprep.subr.mxu0 0.0
    %86 = vmatpush1.msra.mxu0 0.0
    %87 = vmatprep.subr.mxu0 0.0
    %88 = vmatpush1.msra.mxu0 0.0
    %89 = vmatprep.subr.mxu0 0.0
    %90 = vmatpush1.msra.mxu0 0.0
    %91 = vmatprep.subr.mxu0 0.0
    %92 = vmatpush1.msra.mxu0 0.0
    %93 = vmatprep.subr.mxu0 0.0
    %94 = vmatpush1.msra.mxu0 0.0
    %95 = vmatprep.subr.mxu0 0.0
    %96 = vmatpush1.msra.mxu0 0.0
    %97 = vmatprep.subr.mxu0 0.0
    %98 = vmatpush1.msra.mxu0 0.0
    %99 = vmatprep.subr.mxu0 0.0
    %100 = vmatpush1.msra.mxu0 0.0
    %101 = vmatprep.subr.mxu0 0.0
    %102 = vmatpush1.msra.mxu0 0.0
    %103 = vmatprep.subr.mxu0 0.0
    %104 = vmatpush1.msra.mxu0 0.0
    %105 = vmatprep.subr.mxu0 0.0
    %106 = vmatpush1.msra.mxu0 %v60
    %107 = vmatprep.subr.mxu0 0.0
    %108 = vmatpush2.msra.mxu0 0.0
    %109 = vmatprep.subr.mxu0 0.0
    %110 = vmatpush2.msra.mxu0 0.0
    %111 = vmatprep.subr.mxu0 0.0
    %112 = vmatpush2.msra.mxu0 0.0
    %113 = vmatprep.subr.mxu0 0.0
    %114 = vmatpush2.msra.mxu0 0.0
    %115 = vmatprep.subr.mxu0 0.0
    %116 = vmatpush2.msra.mxu0 0.0
    %117 = vmatprep.subr.mxu0 0.0
    %118 = vmatpush2.msra.mxu0 0.0
    %119 = vmatprep.subr.mxu0 0.0
    %120 = vmatpush2.msra.mxu0 0.0
    %121 = vmatprep.subr.mxu0 0.0
    %122 = vmatpush2.msra.mxu0 0.0
    %123 = vmatprep.subr.mxu0 0.0
    %124 = vmatpush2.msra.mxu0 0.0
    %125 = vmatprep.subr.mxu0 0.0
    %126 = vmatpush2.msra.mxu0 0.0
    %127 = vmatprep.subr.mxu0 0.0
    %128 = vmatpush2.msra.mxu0 0.0
    %129 = vmatprep.subr.mxu0 0.0
    %130 = vmatpush2.msra.mxu0 0.0
    %131 = vmatprep.subr.mxu0 0.0
    %132 = vmatpush2.msra.mxu0 0.0
    %133 = vmatprep.subr.mxu0 0.0
    %134 = vmatpush2.msra.mxu0 0.0
    %135 = vmatprep.subr.mxu0 0.0
    %136 = vmatpush2.msra.mxu0 0.0
    %137 = vmatprep.subr.mxu0 0.0
    %138 = vmatpush2.msra.mxu0 0.0
    %139 = vmatprep.mubr.f32.mxu0 0.0
    %140 = vmatmul.mubr.f32.gmra.mxu0 %v70
    %v141 = vpop.f32.mrf.mxu0
    %v142 = vadd.f32 %v66, %v141
    %v143 = vpop.f32.mrf.mxu0
    %144 = vmatprep.mubr.f32.mxu0 0.0
    %145 = vmatmul.mubr.f32.gmra.mxu0 %v73
    %v146 = vpop.f32.mrf.mxu0
    %v147 = vadd.f32 %v66, %v146
    %v148 = vpop.f32.mrf.mxu0
    %149 = vdwg.mxu0
    %v150 = vld [vmem:[%s3] sm:$0xff]
    %v151 = vld [vmem:[%s3 + $0x8] sm:$0xff]
    %v152 = vld [vmem:[%s3 + $0x10] sm:$0xff]
    %v153 = vld [vmem:[%s3 + $0x18] sm:$0xff]
    %v155 = vrot.slane %v147, 7
    %vm157 = vcmask 1040384
    %v158 = vsel %vm157, %v142, %v155
    %vm159 = vcmask 261120
    %v161 = vsel %vm159, 0.0, 0
    %163 = vmatprep.subr.mxu0 0.0
    %164 = vmatpush1.msra.mxu0 0.0
    %165 = vmatprep.subr.mxu0 0.0
    %166 = vmatpush1.msra.mxu0 0.0
    %167 = vmatprep.subr.mxu0 0.0
    %168 = vmatpush1.msra.mxu0 0.0
    %169 = vmatprep.subr.mxu0 0.0
    %170 = vmatpush1.msra.mxu0 0.0
    %171 = vmatprep.subr.mxu0 0.0
    %172 = vmatpush1.msra.mxu0 0.0
    %173 = vmatprep.subr.mxu0 0.0
    %174 = vmatpush1.msra.mxu0 0.0
    %175 = vmatprep.subr.mxu0 0.0
    %176 = vmatpush1.msra.mxu0 0.0
    %177 = vmatprep.subr.mxu0 0.0
    %178 = vmatpush1.msra.mxu0 0.0
    %179 = vmatprep.subr.mxu0 0.0
    %180 = vmatpush1.msra.mxu0 0.0
    %181 = vmatprep.subr.mxu0 0.0
    %182 = vmatpush1.msra.mxu0 0.0
    %183 = vmatprep.subr.mxu0 0.0
    %184 = vmatpush1.msra.mxu0 0.0
    %185 = vmatprep.subr.mxu0 0.0
    %186 = vmatpush1.msra.mxu0 0.0
    %187 = vmatprep.subr.mxu0 0.0
    %188 = vmatpush1.msra.mxu0 %v153
    %189 = vmatprep.subr.mxu0 0.0
    %190 = vmatpush1.msra.mxu0 %v152
    %191 = vmatprep.subr.mxu0 0.0
    %192 = vmatpush1.msra.mxu0 %v151
    %193 = vmatprep.subr.mxu0 0.0
    %194 = vmatpush1.msra.mxu0 %v150
    %195 = vmatprep.subr.mxu0 0.0
    %196 = vmatpush2.msra.mxu0 0.0
    %197 = vmatprep.subr.mxu0 0.0
    %198 = vmatpush2.msra.mxu0 0.0
    %199 = vmatprep.subr.mxu0 0.0
    %200 = vmatpush2.msra.mxu0 0.0
    %201 = vmatprep.subr.mxu0 0.0
    %202 = vmatpush2.msra.mxu0 0.0
    %203 = vmatprep.subr.mxu0 0.0
    %204 = vmatpush2.msra.mxu0 0.0
    %205 = vmatprep.subr.mxu0 0.0
    %206 = vmatpush2.msra.mxu0 0.0
    %207 = vmatprep.subr.mxu0 0.0
    %208 = vmatpush2.msra.mxu0 0.0
    %209 = vmatprep.subr.mxu0 0.0
    %210 = vmatpush2.msra.mxu0 0.0
    %211 = vmatprep.subr.mxu0 0.0
    %212 = vmatpush2.msra.mxu0 0.0
    %213 = vmatprep.subr.mxu0 0.0
    %214 = vmatpush2.msra.mxu0 0.0
    %215 = vmatprep.subr.mxu0 0.0
    %216 = vmatpush2.msra.mxu0 0.0
    %217 = vmatprep.subr.mxu0 0.0
    %218 = vmatpush2.msra.mxu0 0.0
    %219 = vmatprep.subr.mxu0 0.0
    %220 = vmatpush2.msra.mxu0 0.0
    %221 = vmatprep.subr.mxu0 0.0
    %222 = vmatpush2.msra.mxu0 0.0
    %223 = vmatprep.subr.mxu0 0.0
    %224 = vmatpush2.msra.mxu0 0.0
    %225 = vmatprep.subr.mxu0 0.0
    %226 = vmatpush2.msra.mxu0 0.0
    %227 = vmatprep.mubr.f32.mxu0 0.0
    %228 = vmatmul.mubr.f32.gmra.mxu0 %v161
    %v229 = vpop.f32.mrf.mxu0
    %v230 = vadd.f32 0.0, %v229
    %v231 = vpop.f32.mrf.mxu0
    %232 = vdwg.mxu0
    %v233 = vadd.f32 %v158, %v230
    %v234 = vxor.u32 %v233, 2147483648
    %v235 = vmul.f32 %v234, 1.442695
    %v236 = vpow.pop %v235
    %v237 = vadd.f32 %v236, 1.0
    %v238 = vrcp.pop %v237
    %v239 = vmul.f32 1.0, %v238
    %v240 = vtanh.pop %v233
    %v241 = vmul.f32 %v239, 0.0
    %243 = vrot.lane.b32.xlu0 %v240, 64
    %v244 = vpop.permute.xlu0 %243
    %v246 = vmul.f32 %v239, %v244
    %248 = vrot.lane.b32.xlu0 %v246, 32
    %v249 = vpop.permute.xlu0 %248
    %v251 = vadd.f32 %v241, %v249
    %v252 = vtanh.pop %v251
    %254 = vrot.lane.b32.xlu0 %v252, 64
    %v255 = vpop.permute.xlu0 %254
    %v257 = vmul.f32 %v239, %v255
    %259 = vrot.lane.b32.xlu0 %v257, 32
    %v260 = vpop.permute.xlu0 %259
    %vm262 = vcmask 253952
    %263 = vst.msk [vmem:[#allocation2] sm:$0x1] %vm262, %v260
    %vm264 = vcmask 254977
    %265 = vst.msk [vmem:[#allocation2 + $0x7] sm:$0x2] %vm264, %v260
    %v267 = vrot.slane %v142, 1
    %v269 = vsel %vm157, %v267, %v147
    %v270 = vsel %vm159, %v260, 0
    %272 = vmatprep.subr.mxu0 0.0
    %273 = vmatpush1.msra.mxu0 0.0
    %274 = vmatprep.subr.mxu0 0.0
    %275 = vmatpush1.msra.mxu0 0.0
    %276 = vmatprep.subr.mxu0 0.0
    %277 = vmatpush1.msra.mxu0 0.0
    %278 = vmatprep.subr.mxu0 0.0
    %279 = vmatpush1.msra.mxu0 0.0
    %280 = vmatprep.subr.mxu0 0.0
    %281 = vmatpush1.msra.mxu0 0.0
    %282 = vmatprep.subr.mxu0 0.0
    %283 = vmatpush1.msra.mxu0 0.0
    %284 = vmatprep.subr.mxu0 0.0
    %285 = vmatpush1.msra.mxu0 0.0
    %286 = vmatprep.subr.mxu0 0.0
    %287 = vmatpush1.msra.mxu0 0.0
    %288 = vmatprep.subr.mxu0 0.0
    %289 = vmatpush1.msra.mxu0 0.0
    %290 = vmatprep.subr.mxu0 0.0
    %291 = vmatpush1.msra.mxu0 0.0
    %292 = vmatprep.subr.mxu0 0.0
    %293 = vmatpush1.msra.mxu0 0.0
    %294 = vmatprep.subr.mxu0 0.0
    %295 = vmatpush1.msra.mxu0 0.0
    %296 = vmatprep.subr.mxu0 0.0
    %297 = vmatpush1.msra.mxu0 %v153
    %298 = vmatprep.subr.mxu0 0.0
    %299 = vmatpush1.msra.mxu0 %v152
    %300 = vmatprep.subr.mxu0 0.0
    %301 = vmatpush1.msra.mxu0 %v151
    %302 = vmatprep.subr.mxu0 0.0
    %303 = vmatpush1.msra.mxu0 %v150
    %304 = vmatprep.subr.mxu0 0.0
    %305 = vmatpush2.msra.mxu0 0.0
    %306 = vmatprep.subr.mxu0 0.0
    %307 = vmatpush2.msra.mxu0 0.0
    %308 = vmatprep.subr.mxu0 0.0
    %309 = vmatpush2.msra.mxu0 0.0
    %310 = vmatprep.subr.mxu0 0.0
    %311 = vmatpush2.msra.mxu0 0.0
    %312 = vmatprep.subr.mxu0 0.0
    %313 = vmatpush2.msra.mxu0 0.0
    %314 = vmatprep.subr.mxu0 0.0
    %315 = vmatpush2.msra.mxu0 0.0
    %316 = vmatprep.subr.mxu0 0.0
    %317 = vmatpush2.msra.mxu0 0.0
    %318 = vmatprep.subr.mxu0 0.0
    %319 = vmatpush2.msra.mxu0 0.0
    %320 = vmatprep.subr.mxu0 0.0
    %321 = vmatpush2.msra.mxu0 0.0
    %322 = vmatprep.subr.mxu0 0.0
    %323 = vmatpush2.msra.mxu0 0.0
    %324 = vmatprep.subr.mxu0 0.0
    %325 = vmatpush2.msra.mxu0 0.0
    %326 = vmatprep.subr.mxu0 0.0
    %327 = vmatpush2.msra.mxu0 0.0
    %328 = vmatprep.subr.mxu0 0.0
    %329 = vmatpush2.msra.mxu0 0.0
    %330 = vmatprep.subr.mxu0 0.0
    %331 = vmatpush2.msra.mxu0 0.0
    %332 = vmatprep.subr.mxu0 0.0
    %333 = vmatpush2.msra.mxu0 0.0
    %334 = vmatprep.subr.mxu0 0.0
    %335 = vmatpush2.msra.mxu0 0.0
    %336 = vmatprep.mubr.f32.mxu0 0.0
    %337 = vmatmul.mubr.f32.gmra.mxu0 %v270
    %v338 = vpop.f32.mrf.mxu0
    %v339 = vadd.f32 0.0, %v338
    %v340 = vpop.f32.mrf.mxu0
    %341 = vdwg.mxu0
    %v342 = vadd.f32 %v269, %v339
    %v343 = vxor.u32 %v342, 2147483648
    %v344 = vmul.f32 %v343, 1.442695
    %v345 = vpow.pop %v344
    %v346 = vadd.f32 %v345, 1.0
    %v347 = vrcp.pop %v346
    %v348 = vmul.f32 1.0, %v347
    %v349 = vtanh.pop %v342
    %v350 = vmul.f32 %v348, %v251
    %352 = vrot.lane.b32.xlu0 %v349, 64
    %v353 = vpop.permute.xlu0 %352
    %v355 = vmul.f32 %v348, %v353
    %357 = vrot.lane.b32.xlu0 %v355, 32
    %v358 = vpop.permute.xlu0 %357
    %v360 = vadd.f32 %v350, %v358
    %v361 = vtanh.pop %v360
    %363 = vrot.lane.b32.xlu0 %v361, 64
    %v364 = vpop.permute.xlu0 %363
    %v366 = vmul.f32 %v348, %v364
    %368 = vrot.lane.b32.xlu0 %v366, 32
    %v369 = vpop.permute.xlu0 %368
    %371 = vst.msk [vmem:[#allocation2 + $0x1] sm:$0x1] %vm262, %v369
    %372 = vst.msk [vmem:[#allocation2 + $0x8] sm:$0x2] %vm264, %v369
    %v373 = vrot.slane %v142, 2
    %v375 = vrot.slane %v147, 1
    %v377 = vsel %vm157, %v373, %v375
    %v378 = vsel %vm159, %v369, 0
    %380 = vmatprep.subr.mxu0 0.0
    %381 = vmatpush1.msra.mxu0 0.0
    %382 = vmatprep.subr.mxu0 0.0
    %383 = vmatpush1.msra.mxu0 0.0
    %384 = vmatprep.subr.mxu0 0.0
    %385 = vmatpush1.msra.mxu0 0.0
    %386 = vmatprep.subr.mxu0 0.0
    %387 = vmatpush1.msra.mxu0 0.0
    %388 = vmatprep.subr.mxu0 0.0
    %389 = vmatpush1.msra.mxu0 0.0
    %390 = vmatprep.subr.mxu0 0.0
    %391 = vmatpush1.msra.mxu0 0.0
    %392 = vmatprep.subr.mxu0 0.0
    %393 = vmatpush1.msra.mxu0 0.0
    %394 = vmatprep.subr.mxu0 0.0
    %395 = vmatpush1.msra.mxu0 0.0
    %396 = vmatprep.subr.mxu0 0.0
    %397 = vmatpush1.msra.mxu0 0.0
    %398 = vmatprep.subr.mxu0 0.0
    %399 = vmatpush1.msra.mxu0 0.0
    %400 = vmatprep.subr.mxu0 0.0
    %401 = vmatpush1.msra.mxu0 0.0
    %402 = vmatprep.subr.mxu0 0.0
    %403 = vmatpush1.msra.mxu0 0.0
    %404 = vmatprep.subr.mxu0 0.0
    %405 = vmatpush1.msra.mxu0 %v153
    %406 = vmatprep.subr.mxu0 0.0
    %407 = vmatpush1.msra.mxu0 %v152
    %408 = vmatprep.subr.mxu0 0.0
    %409 = vmatpush1.msra.mxu0 %v151
    %410 = vmatprep.subr.mxu0 0.0
    %411 = vmatpush1.msra.mxu0 %v150
    %412 = vmatprep.subr.mxu0 0.0
    %413 = vmatpush2.msra.mxu0 0.0
    %414 = vmatprep.subr.mxu0 0.0
    %415 = vmatpush2.msra.mxu0 0.0
    %416 = vmatprep.subr.mxu0 0.0
    %417 = vmatpush2.msra.mxu0 0.0
    %418 = vmatprep.subr.mxu0 0.0
    %419 = vmatpush2.msra.mxu0 0.0
    %420 = vmatprep.subr.mxu0 0.0
    %421 = vmatpush2.msra.mxu0 0.0
    %422 = vmatprep.subr.mxu0 0.0
    %423 = vmatpush2.msra.mxu0 0.0
    %424 = vmatprep.subr.mxu0 0.0
    %425 = vmatpush2.msra.mxu0 0.0
    %426 = vmatprep.subr.mxu0 0.0
    %427 = vmatpush2.msra.mxu0 0.0
    %428 = vmatprep.subr.mxu0 0.0
    %429 = vmatpush2.msra.mxu0 0.0
    %430 = vmatprep.subr.mxu0 0.0
    %431 = vmatpush2.msra.mxu0 0.0
    %432 = vmatprep.subr.mxu0 0.0
    %433 = vmatpush2.msra.mxu0 0.0
    %434 = vmatprep.subr.mxu0 0.0
    %435 = vmatpush2.msra.mxu0 0.0
    %436 = vmatprep.subr.mxu0 0.0
    %437 = vmatpush2.msra.mxu0 0.0
    %438 = vmatprep.subr.mxu0 0.0
    %439 = vmatpush2.msra.mxu0 0.0
    %440 = vmatprep.subr.mxu0 0.0
    %441 = vmatpush2.msra.mxu0 0.0
    %442 = vmatprep.subr.mxu0 0.0
    %443 = vmatpush2.msra.mxu0 0.0
    %444 = vmatprep.mubr.f32.mxu0 0.0
    %445 = vmatmul.mubr.f32.gmra.mxu0 %v378
    %v446 = vpop.f32.mrf.mxu0
    %v447 = vadd.f32 0.0, %v446
    %v448 = vpop.f32.mrf.mxu0
    %449 = vdwg.mxu0
    %v450 = vadd.f32 %v377, %v447
    %v451 = vxor.u32 %v450, 2147483648
    %v452 = vmul.f32 %v451, 1.442695
    %v453 = vpow.pop %v452
    %v454 = vadd.f32 %v453, 1.0
    %v455 = vrcp.pop %v454
    %v456 = vmul.f32 1.0, %v455
    %v457 = vtanh.pop %v450
    %v458 = vmul.f32 %v456, %v360
    %460 = vrot.lane.b32.xlu0 %v457, 64
    %v461 = vpop.permute.xlu0 %460
    %v463 = vmul.f32 %v456, %v461
    %465 = vrot.lane.b32.xlu0 %v463, 32
    %v466 = vpop.permute.xlu0 %465
    %v468 = vadd.f32 %v458, %v466
    %v469 = vtanh.pop %v468
    %471 = vrot.lane.b32.xlu0 %v469, 64
    %v472 = vpop.permute.xlu0 %471
    %v474 = vmul.f32 %v456, %v472
    %476 = vrot.lane.b32.xlu0 %v474, 32
    %v477 = vpop.permute.xlu0 %476
    %479 = vst.msk [vmem:[#allocation2 + $0x2] sm:$0x1] %vm262, %v477
    %480 = vst.msk [vmem:[#allocation2 + $0x9] sm:$0x2] %vm264, %v477
    %v481 = vrot.slane %v142, 3
    %v483 = vrot.slane %v147, 2
    %v485 = vsel %vm157, %v481, %v483
    %v486 = vsel %vm159, %v477, 0
    %488 = vmatprep.subr.mxu0 0.0
    %489 = vmatpush1.msra.mxu0 0.0
    %490 = vmatprep.subr.mxu0 0.0
    %491 = vmatpush1.msra.mxu0 0.0
    %492 = vmatprep.subr.mxu0 0.0
    %493 = vmatpush1.msra.mxu0 0.0
    %494 = vmatprep.subr.mxu0 0.0
    %495 = vmatpush1.msra.mxu0 0.0
    %496 = vmatprep.subr.mxu0 0.0
    %497 = vmatpush1.msra.mxu0 0.0
    %498 = vmatprep.subr.mxu0 0.0
    %499 = vmatpush1.msra.mxu0 0.0
    %500 = vmatprep.subr.mxu0 0.0
    %501 = vmatpush1.msra.mxu0 0.0
    %502 = vmatprep.subr.mxu0 0.0
    %503 = vmatpush1.msra.mxu0 0.0
    %504 = vmatprep.subr.mxu0 0.0
    %505 = vmatpush1.msra.mxu0 0.0
    %506 = vmatprep.subr.mxu0 0.0
    %507 = vmatpush1.msra.mxu0 0.0
    %508 = vmatprep.subr.mxu0 0.0
    %509 = vmatpush1.msra.mxu0 0.0
    %510 = vmatprep.subr.mxu0 0.0
    %511 = vmatpush1.msra.mxu0 0.0
    %512 = vmatprep.subr.mxu0 0.0
    %513 = vmatpush1.msra.mxu0 %v153
    %514 = vmatprep.subr.mxu0 0.0
    %515 = vmatpush1.msra.mxu0 %v152
    %516 = vmatprep.subr.mxu0 0.0
    %517 = vmatpush1.msra.mxu0 %v151
    %518 = vmatprep.subr.mxu0 0.0
    %519 = vmatpush1.msra.mxu0 %v150
    %520 = vmatprep.subr.mxu0 0.0
    %521 = vmatpush2.msra.mxu0 0.0
    %522 = vmatprep.subr.mxu0 0.0
    %523 = vmatpush2.msra.mxu0 0.0
    %524 = vmatprep.subr.mxu0 0.0
    %525 = vmatpush2.msra.mxu0 0.0
    %526 = vmatprep.subr.mxu0 0.0
    %527 = vmatpush2.msra.mxu0 0.0
    %528 = vmatprep.subr.mxu0 0.0
    %529 = vmatpush2.msra.mxu0 0.0
    %530 = vmatprep.subr.mxu0 0.0
    %531 = vmatpush2.msra.mxu0 0.0
    %532 = vmatprep.subr.mxu0 0.0
    %533 = vmatpush2.msra.mxu0 0.0
    %534 = vmatprep.subr.mxu0 0.0
    %535 = vmatpush2.msra.mxu0 0.0
    %536 = vmatprep.subr.mxu0 0.0
    %537 = vmatpush2.msra.mxu0 0.0
    %538 = vmatprep.subr.mxu0 0.0
    %539 = vmatpush2.msra.mxu0 0.0
    %540 = vmatprep.subr.mxu0 0.0
    %541 = vmatpush2.msra.mxu0 0.0
    %542 = vmatprep.subr.mxu0 0.0
    %543 = vmatpush2.msra.mxu0 0.0
    %544 = vmatprep.subr.mxu0 0.0
    %545 = vmatpush2.msra.mxu0 0.0
    %546 = vmatprep.subr.mxu0 0.0
    %547 = vmatpush2.msra.mxu0 0.0
    %548 = vmatprep.subr.mxu0 0.0
    %549 = vmatpush2.msra.mxu0 0.0
    %550 = vmatprep.subr.mxu0 0.0
    %551 = vmatpush2.msra.mxu0 0.0
    %552 = vmatprep.mubr.f32.mxu0 0.0
    %553 = vmatmul.mubr.f32.gmra.mxu0 %v486
    %v554 = vpop.f32.mrf.mxu0
    %v555 = vadd.f32 0.0, %v554
    %v556 = vpop.f32.mrf.mxu0
    %557 = vdwg.mxu0
    %v558 = vadd.f32 %v485, %v555
    %v559 = vxor.u32 %v558, 2147483648
    %v560 = vmul.f32 %v559, 1.442695
    %v561 = vpow.pop %v560
    %v562 = vadd.f32 %v561, 1.0
    %v563 = vrcp.pop %v562
    %v564 = vmul.f32 1.0, %v563
    %v565 = vtanh.pop %v558
    %v566 = vmul.f32 %v564, %v468
    %568 = vrot.lane.b32.xlu0 %v565, 64
    %v569 = vpop.permute.xlu0 %568
    %v571 = vmul.f32 %v564, %v569
    %573 = vrot.lane.b32.xlu0 %v571, 32
    %v574 = vpop.permute.xlu0 %573
    %v576 = vadd.f32 %v566, %v574
    %v577 = vtanh.pop %v576
    %579 = vrot.lane.b32.xlu0 %v577, 64
    %v580 = vpop.permute.xlu0 %579
    %v582 = vmul.f32 %v564, %v580
    %584 = vrot.lane.b32.xlu0 %v582, 32
    %v585 = vpop.permute.xlu0 %584
    %587 = vst.msk [vmem:[#allocation2 + $0x3] sm:$0x1] %vm262, %v585
    %588 = vst.msk [vmem:[#allocation2 + $0xa] sm:$0x2] %vm264, %v585
    %v589 = vrot.slane %v142, 4
    %v591 = vrot.slane %v147, 3
    %v593 = vsel %vm157, %v589, %v591
    %v594 = vsel %vm159, %v585, 0
    %596 = vmatprep.subr.mxu0 0.0
    %597 = vmatpush1.msra.mxu0 0.0
    %598 = vmatprep.subr.mxu0 0.0
    %599 = vmatpush1.msra.mxu0 0.0
    %600 = vmatprep.subr.mxu0 0.0
    %601 = vmatpush1.msra.mxu0 0.0
    %602 = vmatprep.subr.mxu0 0.0
    %603 = vmatpush1.msra.mxu0 0.0
    %604 = vmatprep.subr.mxu0 0.0
    %605 = vmatpush1.msra.mxu0 0.0
    %606 = vmatprep.subr.mxu0 0.0
    %607 = vmatpush1.msra.mxu0 0.0
    %608 = vmatprep.subr.mxu0 0.0
    %609 = vmatpush1.msra.mxu0 0.0
    %610 = vmatprep.subr.mxu0 0.0
    %611 = vmatpush1.msra.mxu0 0.0
    %612 = vmatprep.subr.mxu0 0.0
    %613 = vmatpush1.msra.mxu0 0.0
    %614 = vmatprep.subr.mxu0 0.0
    %615 = vmatpush1.msra.mxu0 0.0
    %616 = vmatprep.subr.mxu0 0.0
    %617 = vmatpush1.msra.mxu0 0.0
    %618 = vmatprep.subr.mxu0 0.0
    %619 = vmatpush1.msra.mxu0 0.0
    %620 = vmatprep.subr.mxu0 0.0
    %621 = vmatpush1.msra.mxu0 %v153
    %622 = vmatprep.subr.mxu0 0.0
    %623 = vmatpush1.msra.mxu0 %v152
    %624 = vmatprep.subr.mxu0 0.0
    %625 = vmatpush1.msra.mxu0 %v151
    %626 = vmatprep.subr.mxu0 0.0
    %627 = vmatpush1.msra.mxu0 %v150
    %628 = vmatprep.subr.mxu0 0.0
    %629 = vmatpush2.msra.mxu0 0.0
    %630 = vmatprep.subr.mxu0 0.0
    %631 = vmatpush2.msra.mxu0 0.0
    %632 = vmatprep.subr.mxu0 0.0
    %633 = vmatpush2.msra.mxu0 0.0
    %634 = vmatprep.subr.mxu0 0.0
    %635 = vmatpush2.msra.mxu0 0.0
    %636 = vmatprep.subr.mxu0 0.0
    %637 = vmatpush2.msra.mxu0 0.0
    %638 = vmatprep.subr.mxu0 0.0
    %639 = vmatpush2.msra.mxu0 0.0
    %640 = vmatprep.subr.mxu0 0.0
    %641 = vmatpush2.msra.mxu0 0.0
    %642 = vmatprep.subr.mxu0 0.0
    %643 = vmatpush2.msra.mxu0 0.0
    %644 = vmatprep.subr.mxu0 0.0
    %645 = vmatpush2.msra.mxu0 0.0
    %646 = vmatprep.subr.mxu0 0.0
    %647 = vmatpush2.msra.mxu0 0.0
    %648 = vmatprep.subr.mxu0 0.0
    %649 = vmatpush2.msra.mxu0 0.0
    %650 = vmatprep.subr.mxu0 0.0
    %651 = vmatpush2.msra.mxu0 0.0
    %652 = vmatprep.subr.mxu0 0.0
    %653 = vmatpush2.msra.mxu0 0.0
    %654 = vmatprep.subr.mxu0 0.0
    %655 = vmatpush2.msra.mxu0 0.0
    %656 = vmatprep.subr.mxu0 0.0
    %657 = vmatpush2.msra.mxu0 0.0
    %658 = vmatprep.subr.mxu0 0.0
    %659 = vmatpush2.msra.mxu0 0.0
    %660 = vmatprep.mubr.f32.mxu0 0.0
    %661 = vmatmul.mubr.f32.gmra.mxu0 %v594
    %v662 = vpop.f32.mrf.mxu0
    %v663 = vadd.f32 0.0, %v662
    %v664 = vpop.f32.mrf.mxu0
    %665 = vdwg.mxu0
    %v666 = vadd.f32 %v593, %v663
    %v667 = vxor.u32 %v666, 2147483648
    %v668 = vmul.f32 %v667, 1.442695
    %v669 = vpow.pop %v668
    %v670 = vadd.f32 %v669, 1.0
    %v671 = vrcp.pop %v670
    %v672 = vmul.f32 1.0, %v671
    %v673 = vtanh.pop %v666
    %v674 = vmul.f32 %v672, %v576
    %676 = vrot.lane.b32.xlu0 %v673, 64
    %v677 = vpop.permute.xlu0 %676
    %v679 = vmul.f32 %v672, %v677
    %681 = vrot.lane.b32.xlu0 %v679, 32
    %v682 = vpop.permute.xlu0 %681
    %v684 = vadd.f32 %v674, %v682
    %v685 = vtanh.pop %v684
    %687 = vrot.lane.b32.xlu0 %v685, 64
    %v688 = vpop.permute.xlu0 %687
    %v690 = vmul.f32 %v672, %v688
    %692 = vrot.lane.b32.xlu0 %v690, 32
    %v693 = vpop.permute.xlu0 %692
    %695 = vst.msk [vmem:[#allocation2 + $0x4] sm:$0x1] %vm262, %v693
    %696 = vst.msk [vmem:[#allocation2 + $0xb] sm:$0x2] %vm264, %v693
    %v697 = vrot.slane %v142, 5
    %v699 = vrot.slane %v147, 4
    %v701 = vsel %vm157, %v697, %v699
    %v702 = vsel %vm159, %v693, 0
    %704 = vmatprep.subr.mxu0 0.0
    %705 = vmatpush1.msra.mxu0 0.0
    %706 = vmatprep.subr.mxu0 0.0
    %707 = vmatpush1.msra.mxu0 0.0
    %708 = vmatprep.subr.mxu0 0.0
    %709 = vmatpush1.msra.mxu0 0.0
    %710 = vmatprep.subr.mxu0 0.0
    %711 = vmatpush1.msra.mxu0 0.0
    %712 = vmatprep.subr.mxu0 0.0
    %713 = vmatpush1.msra.mxu0 0.0
    %714 = vmatprep.subr.mxu0 0.0
    %715 = vmatpush1.msra.mxu0 0.0
    %716 = vmatprep.subr.mxu0 0.0
    %717 = vmatpush1.msra.mxu0 0.0
    %718 = vmatprep.subr.mxu0 0.0
    %719 = vmatpush1.msra.mxu0 0.0
    %720 = vmatprep.subr.mxu0 0.0
    %721 = vmatpush1.msra.mxu0 0.0
    %722 = vmatprep.subr.mxu0 0.0
    %723 = vmatpush1.msra.mxu0 0.0
    %724 = vmatprep.subr.mxu0 0.0
    %725 = vmatpush1.msra.mxu0 0.0
    %726 = vmatprep.subr.mxu0 0.0
    %727 = vmatpush1.msra.mxu0 0.0
    %728 = vmatprep.subr.mxu0 0.0
    %729 = vmatpush1.msra.mxu0 %v153
    %730 = vmatprep.subr.mxu0 0.0
    %731 = vmatpush1.msra.mxu0 %v152
    %732 = vmatprep.subr.mxu0 0.0
    %733 = vmatpush1.msra.mxu0 %v151
    %734 = vmatprep.subr.mxu0 0.0
    %735 = vmatpush1.msra.mxu0 %v150
    %736 = vmatprep.subr.mxu0 0.0
    %737 = vmatpush2.msra.mxu0 0.0
    %738 = vmatprep.subr.mxu0 0.0
    %739 = vmatpush2.msra.mxu0 0.0
    %740 = vmatprep.subr.mxu0 0.0
    %741 = vmatpush2.msra.mxu0 0.0
    %742 = vmatprep.subr.mxu0 0.0
    %743 = vmatpush2.msra.mxu0 0.0
    %744 = vmatprep.subr.mxu0 0.0
    %745 = vmatpush2.msra.mxu0 0.0
    %746 = vmatprep.subr.mxu0 0.0
    %747 = vmatpush2.msra.mxu0 0.0
    %748 = vmatprep.subr.mxu0 0.0
    %749 = vmatpush2.msra.mxu0 0.0
    %750 = vmatprep.subr.mxu0 0.0
    %751 = vmatpush2.msra.mxu0 0.0
    %752 = vmatprep.subr.mxu0 0.0
    %753 = vmatpush2.msra.mxu0 0.0
    %754 = vmatprep.subr.mxu0 0.0
    %755 = vmatpush2.msra.mxu0 0.0
    %756 = vmatprep.subr.mxu0 0.0
    %757 = vmatpush2.msra.mxu0 0.0
    %758 = vmatprep.subr.mxu0 0.0
    %759 = vmatpush2.msra.mxu0 0.0
    %760 = vmatprep.subr.mxu0 0.0
    %761 = vmatpush2.msra.mxu0 0.0
    %762 = vmatprep.subr.mxu0 0.0
    %763 = vmatpush2.msra.mxu0 0.0
    %764 = vmatprep.subr.mxu0 0.0
    %765 = vmatpush2.msra.mxu0 0.0
    %766 = vmatprep.subr.mxu0 0.0
    %767 = vmatpush2.msra.mxu0 0.0
    %768 = vmatprep.mubr.f32.mxu0 0.0
    %769 = vmatmul.mubr.f32.gmra.mxu0 %v702
    %v770 = vpop.f32.mrf.mxu0
    %v771 = vadd.f32 0.0, %v770
    %v772 = vpop.f32.mrf.mxu0
    %773 = vdwg.mxu0
    %v774 = vadd.f32 %v701, %v771
    %v775 = vxor.u32 %v774, 2147483648
    %v776 = vmul.f32 %v775, 1.442695
    %v777 = vpow.pop %v776
    %v778 = vadd.f32 %v777, 1.0
    %v779 = vrcp.pop %v778
    %v780 = vmul.f32 1.0, %v779
    %v781 = vtanh.pop %v774
    %v782 = vmul.f32 %v780, %v684
    %784 = vrot.lane.b32.xlu0 %v781, 64
    %v785 = vpop.permute.xlu0 %784
    %v787 = vmul.f32 %v780, %v785
    %789 = vrot.lane.b32.xlu0 %v787, 32
    %v790 = vpop.permute.xlu0 %789
    %v792 = vadd.f32 %v782, %v790
    %v793 = vtanh.pop %v792
    %795 = vrot.lane.b32.xlu0 %v793, 64
    %v796 = vpop.permute.xlu0 %795
    %v798 = vmul.f32 %v780, %v796
    %800 = vrot.lane.b32.xlu0 %v798, 32
    %v801 = vpop.permute.xlu0 %800
    %803 = vst.msk [vmem:[#allocation2 + $0x5] sm:$0x1] %vm262, %v801
    %804 = vst.msk [vmem:[#allocation2 + $0xc] sm:$0x2] %vm264, %v801
    %v805 = vrot.slane %v142, 6
    %v807 = vrot.slane %v147, 5
    %v809 = vsel %vm157, %v805, %v807
    %v810 = vsel %vm159, %v801, 0
    %812 = vmatprep.subr.mxu0 0.0
    %813 = vmatpush1.msra.mxu0 0.0
    %814 = vmatprep.subr.mxu0 0.0
    %815 = vmatpush1.msra.mxu0 0.0
    %816 = vmatprep.subr.mxu0 0.0
    %817 = vmatpush1.msra.mxu0 0.0
    %818 = vmatprep.subr.mxu0 0.0
    %819 = vmatpush1.msra.mxu0 0.0
    %820 = vmatprep.subr.mxu0 0.0
    %821 = vmatpush1.msra.mxu0 0.0
    %822 = vmatprep.subr.mxu0 0.0
    %823 = vmatpush1.msra.mxu0 0.0
    %824 = vmatprep.subr.mxu0 0.0
    %825 = vmatpush1.msra.mxu0 0.0
    %826 = vmatprep.subr.mxu0 0.0
    %827 = vmatpush1.msra.mxu0 0.0
    %828 = vmatprep.subr.mxu0 0.0
    %829 = vmatpush1.msra.mxu0 0.0
    %830 = vmatprep.subr.mxu0 0.0
    %831 = vmatpush1.msra.mxu0 0.0
    %832 = vmatprep.subr.mxu0 0.0
    %833 = vmatpush1.msra.mxu0 0.0
    %834 = vmatprep.subr.mxu0 0.0
    %835 = vmatpush1.msra.mxu0 0.0
    %836 = vmatprep.subr.mxu0 0.0
    %837 = vmatpush1.msra.mxu0 %v153
    %838 = vmatprep.subr.mxu0 0.0
    %839 = vmatpush1.msra.mxu0 %v152
    %840 = vmatprep.subr.mxu0 0.0
    %841 = vmatpush1.msra.mxu0 %v151
    %842 = vmatprep.subr.mxu0 0.0
    %843 = vmatpush1.msra.mxu0 %v150
    %844 = vmatprep.subr.mxu0 0.0
    %845 = vmatpush2.msra.mxu0 0.0
    %846 = vmatprep.subr.mxu0 0.0
    %847 = vmatpush2.msra.mxu0 0.0
    %848 = vmatprep.subr.mxu0 0.0
    %849 = vmatpush2.msra.mxu0 0.0
    %850 = vmatprep.subr.mxu0 0.0
    %851 = vmatpush2.msra.mxu0 0.0
    %852 = vmatprep.subr.mxu0 0.0
    %853 = vmatpush2.msra.mxu0 0.0
    %854 = vmatprep.subr.mxu0 0.0
    %855 = vmatpush2.msra.mxu0 0.0
    %856 = vmatprep.subr.mxu0 0.0
    %857 = vmatpush2.msra.mxu0 0.0
    %858 = vmatprep.subr.mxu0 0.0
    %859 = vmatpush2.msra.mxu0 0.0
    %860 = vmatprep.subr.mxu0 0.0
    %861 = vmatpush2.msra.mxu0 0.0
    %862 = vmatprep.subr.mxu0 0.0
    %863 = vmatpush2.msra.mxu0 0.0
    %864 = vmatprep.subr.mxu0 0.0
    %865 = vmatpush2.msra.mxu0 0.0
    %866 = vmatprep.subr.mxu0 0.0
    %867 = vmatpush2.msra.mxu0 0.0
    %868 = vmatprep.subr.mxu0 0.0
    %869 = vmatpush2.msra.mxu0 0.0
    %870 = vmatprep.subr.mxu0 0.0
    %871 = vmatpush2.msra.mxu0 0.0
    %872 = vmatprep.subr.mxu0 0.0
    %873 = vmatpush2.msra.mxu0 0.0
    %874 = vmatprep.subr.mxu0 0.0
    %875 = vmatpush2.msra.mxu0 0.0
    %876 = vmatprep.mubr.f32.mxu0 0.0
    %877 = vmatmul.mubr.f32.gmra.mxu0 %v810
    %v878 = vpop.f32.mrf.mxu0
    %v879 = vadd.f32 0.0, %v878
    %v880 = vpop.f32.mrf.mxu0
    %881 = vdwg.mxu0
    %v882 = vadd.f32 %v809, %v879
    %v883 = vxor.u32 %v882, 2147483648
    %v884 = vmul.f32 %v883, 1.442695
    %v885 = vpow.pop %v884
    %v886 = vadd.f32 %v885, 1.0
    %v887 = vrcp.pop %v886
    %v888 = vmul.f32 1.0, %v887
    %v889 = vtanh.pop %v882
    %v890 = vmul.f32 %v888, %v792
    %892 = vrot.lane.b32.xlu0 %v889, 64
    %v893 = vpop.permute.xlu0 %892
    %v895 = vmul.f32 %v888, %v893
    %897 = vrot.lane.b32.xlu0 %v895, 32
    %v898 = vpop.permute.xlu0 %897
    %v900 = vadd.f32 %v890, %v898
    %v901 = vtanh.pop %v900
    %903 = vrot.lane.b32.xlu0 %v901, 64
    %v904 = vpop.permute.xlu0 %903
    %v906 = vmul.f32 %v888, %v904
    %908 = vrot.lane.b32.xlu0 %v906, 32
    %v909 = vpop.permute.xlu0 %908
    %911 = vst.msk [vmem:[#allocation2 + $0x6] sm:$0x1] %vm262, %v909
    %912 = vst.msk [vmem:[#allocation2 + $0xd] sm:$0x2] %vm264, %v909
    %v913 = vrot.slane %v142, 7
    %v915 = vrot.slane %v147, 6
    %v917 = vsel %vm157, %v913, %v915
    %v918 = vsel %vm159, %v909, 0
    %920 = vmatprep.subr.mxu0 0.0
    %921 = vmatpush1.msra.mxu0 0.0
    %922 = vmatprep.subr.mxu0 0.0
    %923 = vmatpush1.msra.mxu0 0.0
    %924 = vmatprep.subr.mxu0 0.0
    %925 = vmatpush1.msra.mxu0 0.0
    %926 = vmatprep.subr.mxu0 0.0
    %927 = vmatpush1.msra.mxu0 0.0
    %928 = vmatprep.subr.mxu0 0.0
    %929 = vmatpush1.msra.mxu0 0.0
    %930 = vmatprep.subr.mxu0 0.0
    %931 = vmatpush1.msra.mxu0 0.0
    %932 = vmatprep.subr.mxu0 0.0
    %933 = vmatpush1.msra.mxu0 0.0
    %934 = vmatprep.subr.mxu0 0.0
    %935 = vmatpush1.msra.mxu0 0.0
    %936 = vmatprep.subr.mxu0 0.0
    %937 = vmatpush1.msra.mxu0 0.0
    %938 = vmatprep.subr.mxu0 0.0
    %939 = vmatpush1.msra.mxu0 0.0
    %940 = vmatprep.subr.mxu0 0.0
    %941 = vmatpush1.msra.mxu0 0.0
    %942 = vmatprep.subr.mxu0 0.0
    %943 = vmatpush1.msra.mxu0 0.0
    %944 = vmatprep.subr.mxu0 0.0
    %945 = vmatpush1.msra.mxu0 %v153
    %946 = vmatprep.subr.mxu0 0.0
    %947 = vmatpush1.msra.mxu0 %v152
    %948 = vmatprep.subr.mxu0 0.0
    %949 = vmatpush1.msra.mxu0 %v151
    %950 = vmatprep.subr.mxu0 0.0
    %951 = vmatpush1.msra.mxu0 %v150
    %952 = vmatprep.subr.mxu0 0.0
    %953 = vmatpush2.msra.mxu0 0.0
    %954 = vmatprep.subr.mxu0 0.0
    %955 = vmatpush2.msra.mxu0 0.0
    %956 = vmatprep.subr.mxu0 0.0
    %957 = vmatpush2.msra.mxu0 0.0
    %958 = vmatprep.subr.mxu0 0.0
    %959 = vmatpush2.msra.mxu0 0.0
    %960 = vmatprep.subr.mxu0 0.0
    %961 = vmatpush2.msra.mxu0 0.0
    %962 = vmatprep.subr.mxu0 0.0
    %963 = vmatpush2.msra.mxu0 0.0
    %964 = vmatprep.subr.mxu0 0.0
    %965 = vmatpush2.msra.mxu0 0.0
    %966 = vmatprep.subr.mxu0 0.0
    %967 = vmatpush2.msra.mxu0 0.0
    %968 = vmatprep.subr.mxu0 0.0
    %969 = vmatpush2.msra.mxu0 0.0
    %970 = vmatprep.subr.mxu0 0.0
    %971 = vmatpush2.msra.mxu0 0.0
    %972 = vmatprep.subr.mxu0 0.0
    %973 = vmatpush2.msra.mxu0 0.0
    %974 = vmatprep.subr.mxu0 0.0
    %975 = vmatpush2.msra.mxu0 0.0
    %976 = vmatprep.subr.mxu0 0.0
    %977 = vmatpush2.msra.mxu0 0.0
    %978 = vmatprep.subr.mxu0 0.0
    %979 = vmatpush2.msra.mxu0 0.0
    %980 = vmatprep.subr.mxu0 0.0
    %981 = vmatpush2.msra.mxu0 0.0
    %982 = vmatprep.subr.mxu0 0.0
    %983 = vmatpush2.msra.mxu0 0.0
    %984 = vmatprep.mubr.f32.mxu0 0.0
    %985 = vmatmul.mubr.f32.gmra.mxu0 %v918
    %v986 = vpop.f32.mrf.mxu0
    %v987 = vadd.f32 0.0, %v986
    %v988 = vpop.f32.mrf.mxu0
    %989 = vdwg.mxu0
    %v990 = vadd.f32 %v917, %v987
    %v991 = vxor.u32 %v990, 2147483648
    %v992 = vmul.f32 %v991, 1.442695
    %v993 = vpow.pop %v992
    %v994 = vadd.f32 %v993, 1.0
    %v995 = vrcp.pop %v994
    %v996 = vmul.f32 1.0, %v995
    %v997 = vtanh.pop %v990
    %v998 = vmul.f32 %v996, %v900
    %1000 = vrot.lane.b32.xlu0 %v997, 64
    %v1001 = vpop.permute.xlu0 %1000
    %v1003 = vmul.f32 %v996, %v1001
    %1005 = vrot.lane.b32.xlu0 %v1003, 32
    %v1006 = vpop.permute.xlu0 %1005
    %v1008 = vadd.f32 %v998, %v1006
    %v1009 = vtanh.pop %v1008
    %1011 = vrot.lane.b32.xlu0 %v1009, 64
    %v1012 = vpop.permute.xlu0 %1011
    %v1014 = vmul.f32 %v996, %v1012
    %1016 = vrot.lane.b32.xlu0 %v1014, 32
    %v1017 = vpop.permute.xlu0 %1016
    %1019 = vst.msk [vmem:[#allocation2 + $0x7] sm:$0x1] %vm262, %v1017
    %1020 = vst.msk [vmem:[#allocation2 + $0xe] sm:$0x2] %vm264, %v1017
    %vm1021 = vcmask 254976
    %1022 = vst.msk [vmem:[#allocation5] sm:$0x3] %vm1021, %v1017
    %1024 = vrot.lane.b32.xlu0 %v1008, 96
    %v1025 = vpop.permute.xlu0 %1024
    %1027 = vst.msk [vmem:[#allocation7] sm:$0x3] %vm1021, %v1025
    %v1028 = vld [vmem:[#allocation2] sm:$0xff]
    %v1029 = vld [vmem:[#allocation2 + $0x8] sm:$0xff]
    %v1030 = vld [vmem:[%s1] sm:$0xff]
    %v1031 = vld [vmem:[%s1 + $0x8] sm:$0xff]
    %v1032 = vld [vmem:[%s5] sm:$0xff]
    %v1033 = vld [vmem:[%s5 + $0x8] sm:$0xff]
    %v1034 = vld [vmem:[%s5 + $0x10] sm:$0xff]
    %v1035 = vld [vmem:[%s5 + $0x18] sm:$0xff]
    %v1036 = vld [vmem:[%s6] sm:$0x1]
    %v1038 = vlaneseq
    %v1039 = vshrl.u32 %v1038, 7
    %v1040 = vsub.s32 0, %v1039
    %v1041 = vrot.slane %v1036, %v1040
    %v1044 = vsel %vm159, %v1028, 0
    %v1047 = vsel %vm159, %v1029, 0
    %1049 = vmatprep.subr.mxu0 0.0
    %1050 = vmatpush1.msra.mxu0 0.0
    %1051 = vmatprep.subr.mxu0 0.0
    %1052 = vmatpush1.msra.mxu0 0.0
    %1053 = vmatprep.subr.mxu0 0.0
    %1054 = vmatpush1.msra.mxu0 0.0
    %1055 = vmatprep.subr.mxu0 0.0
    %1056 = vmatpush1.msra.mxu0 0.0
    %1057 = vmatprep.subr.mxu0 0.0
    %1058 = vmatpush1.msra.mxu0 0.0
    %1059 = vmatprep.subr.mxu0 0.0
    %1060 = vmatpush1.msra.mxu0 0.0
    %1061 = vmatprep.subr.mxu0 0.0
    %1062 = vmatpush1.msra.mxu0 0.0
    %1063 = vmatprep.subr.mxu0 0.0
    %1064 = vmatpush1.msra.mxu0 0.0
    %1065 = vmatprep.subr.mxu0 0.0
    %1066 = vmatpush1.msra.mxu0 0.0
    %1067 = vmatprep.subr.mxu0 0.0
    %1068 = vmatpush1.msra.mxu0 0.0
    %1069 = vmatprep.subr.mxu0 0.0
    %1070 = vmatpush1.msra.mxu0 0.0
    %1071 = vmatprep.subr.mxu0 0.0
    %1072 = vmatpush1.msra.mxu0 0.0
    %1073 = vmatprep.subr.mxu0 0.0
    %1074 = vmatpush1.msra.mxu0 %v1035
    %1075 = vmatprep.subr.mxu0 0.0
    %1076 = vmatpush1.msra.mxu0 %v1034
    %1077 = vmatprep.subr.mxu0 0.0
    %1078 = vmatpush1.msra.mxu0 %v1033
    %1079 = vmatprep.subr.mxu0 0.0
    %1080 = vmatpush1.msra.mxu0 %v1032
    %1081 = vmatprep.subr.mxu0 0.0
    %1082 = vmatpush2.msra.mxu0 0.0
    %1083 = vmatprep.subr.mxu0 0.0
    %1084 = vmatpush2.msra.mxu0 0.0
    %1085 = vmatprep.subr.mxu0 0.0
    %1086 = vmatpush2.msra.mxu0 0.0
    %1087 = vmatprep.subr.mxu0 0.0
    %1088 = vmatpush2.msra.mxu0 0.0
    %1089 = vmatprep.subr.mxu0 0.0
    %1090 = vmatpush2.msra.mxu0 0.0
    %1091 = vmatprep.subr.mxu0 0.0
    %1092 = vmatpush2.msra.mxu0 0.0
    %1093 = vmatprep.subr.mxu0 0.0
    %1094 = vmatpush2.msra.mxu0 0.0
    %1095 = vmatprep.subr.mxu0 0.0
    %1096 = vmatpush2.msra.mxu0 0.0
    %1097 = vmatprep.subr.mxu0 0.0
    %1098 = vmatpush2.msra.mxu0 0.0
    %1099 = vmatprep.subr.mxu0 0.0
    %1100 = vmatpush2.msra.mxu0 0.0
    %1101 = vmatprep.subr.mxu0 0.0
    %1102 = vmatpush2.msra.mxu0 0.0
    %1103 = vmatprep.subr.mxu0 0.0
    %1104 = vmatpush2.msra.mxu0 0.0
    %1105 = vmatprep.subr.mxu0 0.0
    %1106 = vmatpush2.msra.mxu0 0.0
    %1107 = vmatprep.subr.mxu0 0.0
    %1108 = vmatpush2.msra.mxu0 0.0
    %1109 = vmatprep.subr.mxu0 0.0
    %1110 = vmatpush2.msra.mxu0 0.0
    %1111 = vmatprep.subr.mxu0 0.0
    %1112 = vmatpush2.msra.mxu0 0.0
    %1113 = vmatprep.mubr.f32.mxu0 0.0
    %1114 = vmatmul.mubr.f32.gmra.mxu0 %v1044
    %v1115 = vpop.f32.mrf.mxu0
    %v1116 = vadd.f32 %v1041, %v1115
    %v1117 = vpop.f32.mrf.mxu0
    %1118 = vmatprep.mubr.f32.mxu0 0.0
    %1119 = vmatmul.mubr.f32.gmra.mxu0 %v1047
    %v1120 = vpop.f32.mrf.mxu0
    %v1121 = vadd.f32 %v1041, %v1120
    %v1122 = vpop.f32.mrf.mxu0
    %1123 = vdwg.mxu0
    %vm1124 = vcmp.gt.f32.partialorder %v1116, 0.0
    %vm1125 = vcmp.gt.f32.partialorder %v1121, 0.0
    %v1126 = vmin.f32 %v1116, 0.0
    %v1127 = vmin.f32 %v1121, 0.0
    %v1128 = vmul.f32 %v1126, 1.442695
    %v1129 = vpow.pop %v1128
    %v1130 = vmul.f32 %v1127, 1.442695
    %v1131 = vpow.pop %v1130
    %v1132 = vsub.f32 %v1129, 1.0
    %v1133 = vsub.f32 %v1131, 1.0
    %v1134 = vsel %vm1124, %v1116, %v1132
    %v1135 = vsel %vm1125, %v1121, %v1133
    %v1136 = vld [vmem:[%s7] sm:$0xff]
    %v1137 = vld [vmem:[%s7 + $0x8] sm:$0xff]
    %v1138 = vld [vmem:[%s8] sm:$0x1]
    %v1140 = vlaneseq
    %v1141 = vshrl.u32 %v1140, 7
    %v1142 = vsub.s32 0, %v1141
    %v1143 = vrot.slane %v1138, %v1142
    %vm1145 = vcmask 130048
    %v1147 = vsel %vm1145, %v1134, 0
    %v1150 = vsel %vm1145, %v1135, 0
    %1152 = vmatprep.subr.mxu0 0.0
    %1153 = vmatpush1.msra.mxu0 0.0
    %1154 = vmatprep.subr.mxu0 0.0
    %1155 = vmatpush1.msra.mxu0 0.0
    %1156 = vmatprep.subr.mxu0 0.0
    %1157 = vmatpush1.msra.mxu0 0.0
    %1158 = vmatprep.subr.mxu0 0.0
    %1159 = vmatpush1.msra.mxu0 0.0
    %1160 = vmatprep.subr.mxu0 0.0
    %1161 = vmatpush1.msra.mxu0 0.0
    %1162 = vmatprep.subr.mxu0 0.0
    %1163 = vmatpush1.msra.mxu0 0.0
    %1164 = vmatprep.subr.mxu0 0.0
    %1165 = vmatpush1.msra.mxu0 0.0
    %1166 = vmatprep.subr.mxu0 0.0
    %1167 = vmatpush1.msra.mxu0 0.0
    %1168 = vmatprep.subr.mxu0 0.0
    %1169 = vmatpush1.msra.mxu0 0.0
    %1170 = vmatprep.subr.mxu0 0.0
    %1171 = vmatpush1.msra.mxu0 0.0
    %1172 = vmatprep.subr.mxu0 0.0
    %1173 = vmatpush1.msra.mxu0 0.0
    %1174 = vmatprep.subr.mxu0 0.0
    %1175 = vmatpush1.msra.mxu0 0.0
    %1176 = vmatprep.subr.mxu0 0.0
    %1177 = vmatpush1.msra.mxu0 0.0
    %1178 = vmatprep.subr.mxu0 0.0
    %1179 = vmatpush1.msra.mxu0 0.0
    %1180 = vmatprep.subr.mxu0 0.0
    %1181 = vmatpush1.msra.mxu0 %v1137
    %1182 = vmatprep.subr.mxu0 0.0
    %1183 = vmatpush1.msra.mxu0 %v1136
    %1184 = vmatprep.subr.mxu0 0.0
    %1185 = vmatpush2.msra.mxu0 0.0
    %1186 = vmatprep.subr.mxu0 0.0
    %1187 = vmatpush2.msra.mxu0 0.0
    %1188 = vmatprep.subr.mxu0 0.0
    %1189 = vmatpush2.msra.mxu0 0.0
    %1190 = vmatprep.subr.mxu0 0.0
    %1191 = vmatpush2.msra.mxu0 0.0
    %1192 = vmatprep.subr.mxu0 0.0
    %1193 = vmatpush2.msra.mxu0 0.0
    %1194 = vmatprep.subr.mxu0 0.0
    %1195 = vmatpush2.msra.mxu0 0.0
    %1196 = vmatprep.subr.mxu0 0.0
    %1197 = vmatpush2.msra.mxu0 0.0
    %1198 = vmatprep.subr.mxu0 0.0
    %1199 = vmatpush2.msra.mxu0 0.0
    %1200 = vmatprep.subr.mxu0 0.0
    %1201 = vmatpush2.msra.mxu0 0.0
    %1202 = vmatprep.subr.mxu0 0.0
    %1203 = vmatpush2.msra.mxu0 0.0
    %1204 = vmatprep.subr.mxu0 0.0
    %1205 = vmatpush2.msra.mxu0 0.0
    %1206 = vmatprep.subr.mxu0 0.0
    %1207 = vmatpush2.msra.mxu0 0.0
    %1208 = vmatprep.subr.mxu0 0.0
    %1209 = vmatpush2.msra.mxu0 0.0
    %1210 = vmatprep.subr.mxu0 0.0
    %1211 = vmatpush2.msra.mxu0 0.0
    %1212 = vmatprep.subr.mxu0 0.0
    %1213 = vmatpush2.msra.mxu0 0.0
    %1214 = vmatprep.subr.mxu0 0.0
    %1215 = vmatpush2.msra.mxu0 0.0
    %1216 = vmatprep.mubr.f32.mxu0 0.0
    %1217 = vmatmul.mubr.f32.gmra.mxu0 %v1147
    %v1218 = vpop.f32.mrf.mxu0
    %v1219 = vadd.f32 %v1143, %v1218
    %v1220 = vpop.f32.mrf.mxu0
    %1221 = vmatprep.mubr.f32.mxu0 0.0
    %1222 = vmatmul.mubr.f32.gmra.mxu0 %v1150
    %v1223 = vpop.f32.mrf.mxu0
    %v1224 = vadd.f32 %v1143, %v1223
    %v1225 = vpop.f32.mrf.mxu0
    %1226 = vdwg.mxu0
    %vm1227 = vcmp.gt.f32.partialorder %v1219, 0.0
    %vm1228 = vcmp.gt.f32.partialorder %v1224, 0.0
    %v1229 = vmin.f32 %v1219, 0.0
    %v1230 = vmin.f32 %v1224, 0.0
    %v1231 = vmul.f32 %v1229, 1.442695
    %v1232 = vpow.pop %v1231
    %v1233 = vmul.f32 %v1230, 1.442695
    %v1234 = vpow.pop %v1233
    %v1235 = vsub.f32 %v1232, 1.0
    %v1236 = vsub.f32 %v1234, 1.0
    %v1237 = vsel %vm1227, %v1219, %v1235
    %v1238 = vsel %vm1228, %v1224, %v1236
    %v1239 = vld [vmem:[%s9] sm:$0xff]
    %v1240 = vld [vmem:[%s9 + $0x8] sm:$0xff]
    %v1241 = vld [vmem:[%s9 + $0x10] sm:$0xff]
    %v1242 = vld [vmem:[%s9 + $0x18] sm:$0xff]
    %v1243 = vld [vmem:[%s10] sm:$0x1]
    %v1245 = vlaneseq
    %v1246 = vshrl.u32 %v1245, 7
    %v1247 = vsub.s32 0, %v1246
    %v1248 = vrot.slane %v1243, %v1247
    %v1251 = vsel %vm159, %v1237, 0
    %v1254 = vsel %vm159, %v1238, 0
    %1256 = vmatprep.subr.mxu0 0.0
    %1257 = vmatpush1.msra.mxu0 0.0
    %1258 = vmatprep.subr.mxu0 0.0
    %1259 = vmatpush1.msra.mxu0 0.0
    %1260 = vmatprep.subr.mxu0 0.0
    %1261 = vmatpush1.msra.mxu0 0.0
    %1262 = vmatprep.subr.mxu0 0.0
    %1263 = vmatpush1.msra.mxu0 0.0
    %1264 = vmatprep.subr.mxu0 0.0
    %1265 = vmatpush1.msra.mxu0 0.0
    %1266 = vmatprep.subr.mxu0 0.0
    %1267 = vmatpush1.msra.mxu0 0.0
    %1268 = vmatprep.subr.mxu0 0.0
    %1269 = vmatpush1.msra.mxu0 0.0
    %1270 = vmatprep.subr.mxu0 0.0
    %1271 = vmatpush1.msra.mxu0 0.0
    %1272 = vmatprep.subr.mxu0 0.0
    %1273 = vmatpush1.msra.mxu0 0.0
    %1274 = vmatprep.subr.mxu0 0.0
    %1275 = vmatpush1.msra.mxu0 0.0
    %1276 = vmatprep.subr.mxu0 0.0
    %1277 = vmatpush1.msra.mxu0 0.0
    %1278 = vmatprep.subr.mxu0 0.0
    %1279 = vmatpush1.msra.mxu0 0.0
    %1280 = vmatprep.subr.mxu0 0.0
    %1281 = vmatpush1.msra.mxu0 %v1242
    %1282 = vmatprep.subr.mxu0 0.0
    %1283 = vmatpush1.msra.mxu0 %v1241
    %1284 = vmatprep.subr.mxu0 0.0
    %1285 = vmatpush1.msra.mxu0 %v1240
    %1286 = vmatprep.subr.mxu0 0.0
    %1287 = vmatpush1.msra.mxu0 %v1239
    %1288 = vmatprep.subr.mxu0 0.0
    %1289 = vmatpush2.msra.mxu0 0.0
    %1290 = vmatprep.subr.mxu0 0.0
    %1291 = vmatpush2.msra.mxu0 0.0
    %1292 = vmatprep.subr.mxu0 0.0
    %1293 = vmatpush2.msra.mxu0 0.0
    %1294 = vmatprep.subr.mxu0 0.0
    %1295 = vmatpush2.msra.mxu0 0.0
    %1296 = vmatprep.subr.mxu0 0.0
    %1297 = vmatpush2.msra.mxu0 0.0
    %1298 = vmatprep.subr.mxu0 0.0
    %1299 = vmatpush2.msra.mxu0 0.0
    %1300 = vmatprep.subr.mxu0 0.0
    %1301 = vmatpush2.msra.mxu0 0.0
    %1302 = vmatprep.subr.mxu0 0.0
    %1303 = vmatpush2.msra.mxu0 0.0
    %1304 = vmatprep.subr.mxu0 0.0
    %1305 = vmatpush2.msra.mxu0 0.0
    %1306 = vmatprep.subr.mxu0 0.0
    %1307 = vmatpush2.msra.mxu0 0.0
    %1308 = vmatprep.subr.mxu0 0.0
    %1309 = vmatpush2.msra.mxu0 0.0
    %1310 = vmatprep.subr.mxu0 0.0
    %1311 = vmatpush2.msra.mxu0 0.0
    %1312 = vmatprep.subr.mxu0 0.0
    %1313 = vmatpush2.msra.mxu0 0.0
    %1314 = vmatprep.subr.mxu0 0.0
    %1315 = vmatpush2.msra.mxu0 0.0
    %1316 = vmatprep.subr.mxu0 0.0
    %1317 = vmatpush2.msra.mxu0 0.0
    %1318 = vmatprep.subr.mxu0 0.0
    %1319 = vmatpush2.msra.mxu0 0.0
    %1320 = vmatprep.mubr.f32.mxu0 0.0
    %1321 = vmatmul.mubr.f32.gmra.mxu0 %v1251
    %v1322 = vpop.f32.mrf.mxu0
    %v1323 = vadd.f32 %v1248, %v1322
    %v1324 = vpop.f32.mrf.mxu0
    %1325 = vmatprep.mubr.f32.mxu0 0.0
    %1326 = vmatmul.mubr.f32.gmra.mxu0 %v1254
    %v1327 = vpop.f32.mrf.mxu0
    %v1328 = vadd.f32 %v1248, %v1327
    %v1329 = vpop.f32.mrf.mxu0
    %1330 = vdwg.mxu0
    %vm1331 = vcmask 31744
    %v1332 = vsel %vm1331, %v1323, -inf
    %1333 = vmax.xlane.f32.xlu0 %v1332
    %v1334 = vpop.xlane.xlu0 %1333
    %v1335 = vsel %vm1331, %v1328, -inf
    %1336 = vmax.xlane.f32.xlu0 %v1335
    %v1337 = vpop.xlane.xlu0 %1336
    %v1338 = vsub.f32 %v1323, %v1334
    %v1339 = vsub.f32 %v1328, %v1337
    %v1340 = vmul.f32 %v1338, 1.442695
    %v1341 = vpow.pop %v1340
    %v1342 = vmul.f32 %v1339, 1.442695
    %v1343 = vpow.pop %v1342
    %v1344 = vsel %vm1331, %v1341, 0.0
    %1345 = vadd.xlane.f32.xlu0 %v1344
    %v1346 = vpop.xlane.xlu0 %1345
    %v1347 = vsel %vm1331, %v1343, 0.0
    %1348 = vadd.xlane.f32.xlu0 %v1347
    %v1349 = vpop.xlane.xlu0 %1348
    %v1350 = vrcp.pop %v1346
    %v1351 = vrcp.pop %v1349
    %v1352 = vmul.f32 %v1341, %v1350
    %v1353 = vmul.f32 %v1343, %v1351
    %v1354 = vld [vmem:[%s11] sm:$0xff]
    %v1355 = vld [vmem:[%s11 + $0x8] sm:$0xff]
    %v1356 = vld [vmem:[%s12] sm:$0xf]
    %v1358 = vsel %vm1331, %v1030, 0
    %v1361 = vsel %vm1331, %v1031, 0
    %vm1363 = vcmask 1043456
    %v1365 = vsel %vm1363, %v1356, 0
    %1367 = vmatprep.subr.mxu0 0.0
    %1368 = vmatpush1.msra.mxu0 0.0
    %1369 = vmatprep.subr.mxu0 0.0
    %1370 = vmatpush1.msra.mxu0 0.0
    %1371 = vmatprep.subr.mxu0 0.0
    %1372 = vmatpush1.msra.mxu0 0.0
    %1373 = vmatprep.subr.mxu0 0.0
    %1374 = vmatpush1.msra.mxu0 0.0
    %1375 = vmatprep.subr.mxu0 0.0
    %1376 = vmatpush1.msra.mxu0 0.0
    %1377 = vmatprep.subr.mxu0 0.0
    %1378 = vmatpush1.msra.mxu0 0.0
    %1379 = vmatprep.subr.mxu0 0.0
    %1380 = vmatpush1.msra.mxu0 0.0
    %1381 = vmatprep.subr.mxu0 0.0
    %1382 = vmatpush1.msra.mxu0 0.0
    %1383 = vmatprep.subr.mxu0 0.0
    %1384 = vmatpush1.msra.mxu0 0.0
    %1385 = vmatprep.subr.mxu0 0.0
    %1386 = vmatpush1.msra.mxu0 0.0
    %1387 = vmatprep.subr.mxu0 0.0
    %1388 = vmatpush1.msra.mxu0 0.0
    %1389 = vmatprep.subr.mxu0 0.0
    %1390 = vmatpush1.msra.mxu0 0.0
    %1391 = vmatprep.subr.mxu0 0.0
    %1392 = vmatpush1.msra.mxu0 0.0
    %1393 = vmatprep.subr.mxu0 0.0
    %1394 = vmatpush1.msra.mxu0 0.0
    %1395 = vmatprep.subr.mxu0 0.0
    %1396 = vmatpush1.msra.mxu0 0.0
    %1397 = vmatprep.subr.mxu0 0.0
    %1398 = vmatpush1.msra.mxu0 %v1365
    %1399 = vmatprep.subr.mxu0 0.0
    %1400 = vmatpush2.msra.mxu0 0.0
    %1401 = vmatprep.subr.mxu0 0.0
    %1402 = vmatpush2.msra.mxu0 0.0
    %1403 = vmatprep.subr.mxu0 0.0
    %1404 = vmatpush2.msra.mxu0 0.0
    %1405 = vmatprep.subr.mxu0 0.0
    %1406 = vmatpush2.msra.mxu0 0.0
    %1407 = vmatprep.subr.mxu0 0.0
    %1408 = vmatpush2.msra.mxu0 0.0
    %1409 = vmatprep.subr.mxu0 0.0
    %1410 = vmatpush2.msra.mxu0 0.0
    %1411 = vmatprep.subr.mxu0 0.0
    %1412 = vmatpush2.msra.mxu0 0.0
    %1413 = vmatprep.subr.mxu0 0.0
    %1414 = vmatpush2.msra.mxu0 0.0
    %1415 = vmatprep.subr.mxu0 0.0
    %1416 = vmatpush2.msra.mxu0 0.0
    %1417 = vmatprep.subr.mxu0 0.0
    %1418 = vmatpush2.msra.mxu0 0.0
    %1419 = vmatprep.subr.mxu0 0.0
    %1420 = vmatpush2.msra.mxu0 0.0
    %1421 = vmatprep.subr.mxu0 0.0
    %1422 = vmatpush2.msra.mxu0 0.0
    %1423 = vmatprep.subr.mxu0 0.0
    %1424 = vmatpush2.msra.mxu0 0.0
    %1425 = vmatprep.subr.mxu0 0.0
    %1426 = vmatpush2.msra.mxu0 0.0
    %1427 = vmatprep.subr.mxu0 0.0
    %1428 = vmatpush2.msra.mxu0 0.0
    %1429 = vmatprep.subr.mxu0 0.0
    %1430 = vmatpush2.msra.mxu0 0.0
    %1431 = vmatprep.mubr.f32.mxu0 0.0
    %1432 = vmatmul.mubr.f32.gmra.mxu0 %v1358
    %v1433 = vpop.f32.mrf.mxu0
    %v1434 = vadd.f32 0.0, %v1433
    %v1435 = vpop.f32.mrf.mxu0
    %1436 = vmatprep.mubr.f32.mxu0 0.0
    %1437 = vmatmul.mubr.f32.gmra.mxu0 %v1361
    %v1438 = vpop.f32.mrf.mxu0
    %v1439 = vadd.f32 0.0, %v1438
    %v1440 = vpop.f32.mrf.mxu0
    %1441 = vdwg.mxu0
    %1442 = vmatprep.subr.mxu0 0.0
    %1443 = vmatpush1.msra.mxu0 0.0
    %1444 = vmatprep.subr.mxu0 0.0
    %1445 = vmatpush1.msra.mxu0 0.0
    %1446 = vmatprep.subr.mxu0 0.0
    %1447 = vmatpush1.msra.mxu0 0.0
    %1448 = vmatprep.subr.mxu0 0.0
    %1449 = vmatpush1.msra.mxu0 0.0
    %1450 = vmatprep.subr.mxu0 0.0
    %1451 = vmatpush1.msra.mxu0 0.0
    %1452 = vmatprep.subr.mxu0 0.0
    %1453 = vmatpush1.msra.mxu0 0.0
    %1454 = vmatprep.subr.mxu0 0.0
    %1455 = vmatpush1.msra.mxu0 0.0
    %1456 = vmatprep.subr.mxu0 0.0
    %1457 = vmatpush1.msra.mxu0 0.0
    %1458 = vmatprep.subr.mxu0 0.0
    %1459 = vmatpush1.msra.mxu0 0.0
    %1460 = vmatprep.subr.mxu0 0.0
    %1461 = vmatpush1.msra.mxu0 0.0
    %1462 = vmatprep.subr.mxu0 0.0
    %1463 = vmatpush1.msra.mxu0 0.0
    %1464 = vmatprep.subr.mxu0 0.0
    %1465 = vmatpush1.msra.mxu0 0.0
    %1466 = vmatprep.subr.mxu0 0.0
    %1467 = vmatpush1.msra.mxu0 0.0
    %1468 = vmatprep.subr.mxu0 0.0
    %1469 = vmatpush1.msra.mxu0 0.0
    %1470 = vmatprep.subr.mxu0 0.0
    %1471 = vmatpush1.msra.mxu0 %v1355
    %1472 = vmatprep.subr.mxu0 0.0
    %1473 = vmatpush1.msra.mxu0 %v1354
    %1474 = vmatprep.subr.mxu0 0.0
    %1475 = vmatpush2.msra.mxu0 0.0
    %1476 = vmatprep.subr.mxu0 0.0
    %1477 = vmatpush2.msra.mxu0 0.0
    %1478 = vmatprep.subr.mxu0 0.0
    %1479 = vmatpush2.msra.mxu0 0.0
    %1480 = vmatprep.subr.mxu0 0.0
    %1481 = vmatpush2.msra.mxu0 0.0
    %1482 = vmatprep.subr.mxu0 0.0
    %1483 = vmatpush2.msra.mxu0 0.0
    %1484 = vmatprep.subr.mxu0 0.0
    %1485 = vmatpush2.msra.mxu0 0.0
    %1486 = vmatprep.subr.mxu0 0.0
    %1487 = vmatpush2.msra.mxu0 0.0
    %1488 = vmatprep.subr.mxu0 0.0
    %1489 = vmatpush2.msra.mxu0 0.0
    %1490 = vmatprep.subr.mxu0 0.0
    %1491 = vmatpush2.msra.mxu0 0.0
    %1492 = vmatprep.subr.mxu0 0.0
    %1493 = vmatpush2.msra.mxu0 0.0
    %1494 = vmatprep.subr.mxu0 0.0
    %1495 = vmatpush2.msra.mxu0 0.0
    %1496 = vmatprep.subr.mxu0 0.0
    %1497 = vmatpush2.msra.mxu0 0.0
    %1498 = vmatprep.subr.mxu0 0.0
    %1499 = vmatpush2.msra.mxu0 0.0
    %1500 = vmatprep.subr.mxu0 0.0
    %1501 = vmatpush2.msra.mxu0 0.0
    %1502 = vmatprep.subr.mxu0 0.0
    %1503 = vmatpush2.msra.mxu0 0.0
    %1504 = vmatprep.subr.mxu0 0.0
    %1505 = vmatpush2.msra.mxu0 0.0
    %1506 = vmatprep.mubr.f32.mxu0 0.0
    %1507 = vmatmul.mubr.f32.gmra.mxu0 %v1147
    %v1508 = vpop.f32.mrf.mxu0
    %v1509 = vadd.f32 %v1434, %v1508
    %v1510 = vpop.f32.mrf.mxu0
    %1511 = vmatprep.mubr.f32.mxu0 0.0
    %1512 = vmatmul.mubr.f32.gmra.mxu0 %v1150
    %v1513 = vpop.f32.mrf.mxu0
    %v1514 = vadd.f32 %v1439, %v1513
    %v1515 = vpop.f32.mrf.mxu0
    %1516 = vdwg.mxu0
    %v1517 = vld [vmem:[%s13] sm:$0x1]
    %v1519 = vlaneseq
    %v1520 = vshrl.u32 %v1519, 7
    %v1521 = vsub.s32 0, %v1520
    %v1522 = vrot.slane %v1517, %v1521
    %v1524 = vadd.f32 %v1509, %v1522
    %v1525 = vadd.f32 %v1514, %v1522
    %vm1526 = vcmp.gt.f32.partialorder %v1524, 0.0
    %vm1527 = vcmp.gt.f32.partialorder %v1525, 0.0
    %v1528 = vmin.f32 %v1524, 0.0
    %v1529 = vmin.f32 %v1525, 0.0
    %v1530 = vmul.f32 %v1528, 1.442695
    %v1531 = vpow.pop %v1530
    %v1532 = vmul.f32 %v1529, 1.442695
    %v1533 = vpow.pop %v1532
    %v1534 = vsub.f32 %v1531, 1.0
    %v1535 = vsub.f32 %v1533, 1.0
    %v1536 = vsel %vm1526, %v1524, %v1534
    %v1537 = vsel %vm1527, %v1525, %v1535
    %v1538 = vld [vmem:[%s14] sm:$0xff]
    %v1539 = vld [vmem:[%s14 + $0x8] sm:$0xff]
    %v1540 = vld [vmem:[%s14 + $0x10] sm:$0xff]
    %v1541 = vld [vmem:[%s14 + $0x18] sm:$0xff]
    %v1542 = vld [vmem:[%s15] sm:$0x1]
    %v1544 = vlaneseq
    %v1545 = vshrl.u32 %v1544, 7
    %v1546 = vsub.s32 0, %v1545
    %v1547 = vrot.slane %v1542, %v1546
    %v1550 = vsel %vm159, %v1536, 0
    %v1553 = vsel %vm159, %v1537, 0
    %1555 = vmatprep.subr.mxu0 0.0
    %1556 = vmatpush1.msra.mxu0 0.0
    %1557 = vmatprep.subr.mxu0 0.0
    %1558 = vmatpush1.msra.mxu0 0.0
    %1559 = vmatprep.subr.mxu0 0.0
    %1560 = vmatpush1.msra.mxu0 0.0
    %1561 = vmatprep.subr.mxu0 0.0
    %1562 = vmatpush1.msra.mxu0 0.0
    %1563 = vmatprep.subr.mxu0 0.0
    %1564 = vmatpush1.msra.mxu0 0.0
    %1565 = vmatprep.subr.mxu0 0.0
    %1566 = vmatpush1.msra.mxu0 0.0
    %1567 = vmatprep.subr.mxu0 0.0
    %1568 = vmatpush1.msra.mxu0 0.0
    %1569 = vmatprep.subr.mxu0 0.0
    %1570 = vmatpush1.msra.mxu0 0.0
    %1571 = vmatprep.subr.mxu0 0.0
    %1572 = vmatpush1.msra.mxu0 0.0
    %1573 = vmatprep.subr.mxu0 0.0
    %1574 = vmatpush1.msra.mxu0 0.0
    %1575 = vmatprep.subr.mxu0 0.0
    %1576 = vmatpush1.msra.mxu0 0.0
    %1577 = vmatprep.subr.mxu0 0.0
    %1578 = vmatpush1.msra.mxu0 0.0
    %1579 = vmatprep.subr.mxu0 0.0
    %1580 = vmatpush1.msra.mxu0 %v1541
    %1581 = vmatprep.subr.mxu0 0.0
    %1582 = vmatpush1.msra.mxu0 %v1540
    %1583 = vmatprep.subr.mxu0 0.0
    %1584 = vmatpush1.msra.mxu0 %v1539
    %1585 = vmatprep.subr.mxu0 0.0
    %1586 = vmatpush1.msra.mxu0 %v1538
    %1587 = vmatprep.subr.mxu0 0.0
    %1588 = vmatpush2.msra.mxu0 0.0
    %1589 = vmatprep.subr.mxu0 0.0
    %1590 = vmatpush2.msra.mxu0 0.0
    %1591 = vmatprep.subr.mxu0 0.0
    %1592 = vmatpush2.msra.mxu0 0.0
    %1593 = vmatprep.subr.mxu0 0.0
    %1594 = vmatpush2.msra.mxu0 0.0
    %1595 = vmatprep.subr.mxu0 0.0
    %1596 = vmatpush2.msra.mxu0 0.0
    %1597 = vmatprep.subr.mxu0 0.0
    %1598 = vmatpush2.msra.mxu0 0.0
    %1599 = vmatprep.subr.mxu0 0.0
    %1600 = vmatpush2.msra.mxu0 0.0
    %1601 = vmatprep.subr.mxu0 0.0
    %1602 = vmatpush2.msra.mxu0 0.0
    %1603 = vmatprep.subr.mxu0 0.0
    %1604 = vmatpush2.msra.mxu0 0.0
    %1605 = vmatprep.subr.mxu0 0.0
    %1606 = vmatpush2.msra.mxu0 0.0
    %1607 = vmatprep.subr.mxu0 0.0
    %1608 = vmatpush2.msra.mxu0 0.0
    %1609 = vmatprep.subr.mxu0 0.0
    %1610 = vmatpush2.msra.mxu0 0.0
    %1611 = vmatprep.subr.mxu0 0.0
    %1612 = vmatpush2.msra.mxu0 0.0
    %1613 = vmatprep.subr.mxu0 0.0
    %1614 = vmatpush2.msra.mxu0 0.0
    %1615 = vmatprep.subr.mxu0 0.0
    %1616 = vmatpush2.msra.mxu0 0.0
    %1617 = vmatprep.subr.mxu0 0.0
    %1618 = vmatpush2.msra.mxu0 0.0
    %1619 = vmatprep.mubr.f32.mxu0 0.0
    %1620 = vmatmul.mubr.f32.gmra.mxu0 %v1550
    %v1621 = vpop.f32.mrf.mxu0
    %v1622 = vadd.f32 %v1547, %v1621
    %v1623 = vpop.f32.mrf.mxu0
    %1624 = vmatprep.mubr.f32.mxu0 0.0
    %1625 = vmatmul.mubr.f32.gmra.mxu0 %v1553
    %v1626 = vpop.f32.mrf.mxu0
    %v1627 = vadd.f32 %v1547, %v1626
    %v1628 = vpop.f32.mrf.mxu0
    %1629 = vdwg.mxu0
    %1632 = vrot.lane.b32.xlu0 %v1352, 16
    %v1633 = vpop.permute.xlu0 %1632
    %1634 = vrot.lane.b32.xlu0 %v1353, 16
    %v1635 = vpop.permute.xlu0 %1634
    %1640 = vrot.lane.b32.xlu0 %v1622, 20
    %v1641 = vpop.permute.xlu0 %1640
    %1642 = vrot.lane.b32.xlu0 %v1627, 20
    %v1643 = vpop.permute.xlu0 %1642
    %v1646 = vsel %vm1145, %v1134, %v1633
    %v1647 = vsel %vm1145, %v1135, %v1635
    %vm1648 = vcmask 162816
    %v1649 = vsel %vm1648, %v1646, %v1641
    %v1650 = vsel %vm1648, %v1647, %v1643
    %vm1651 = vcmask 179200
    %v1652 = vsel %vm1651, %v1649, 0.0
    %v1653 = vsel %vm1651, %v1650, 0.0
    %1654 = vst [vmem:[#allocation3] sm:$0xff] %v1652
    %1655 = vst [vmem:[#allocation3 + $0x8] sm:$0xff] %v1653
    // Predicated region
    $region66: #{tpu_custom_call.1} parent=1 // pred_check
      _
    $region67: #{tpu_custom_call.1} parent=1 // pred_check_branch
      %1657 = sbr.rel (0) target = $region69
    $region68: #{tpu_custom_call.1} parent=1 // pred_region
      %s1659 = ssub.s32 256, 256
      %1660 = vsyncadd [#allocation4], %s1659
      %s1661 = sshll.u32 [#allocation3], 4
      %s1662 = int_to_ptr.vmem [resolvable:$true] %s1661
      %1667 = dma.vmem_to_hbm [thread:$0]  %s1662, 256, %s16, [#allocation4], 128, 128, 8
    $region69: #{tpu_custom_call.1} parent=1 // pred_fallthru
      _
    // Predicated region
    $region70: #{tpu_custom_call.1} parent=1 // pred_check
      _
    $region71: #{tpu_custom_call.1} parent=1 // pred_check_branch
      %1669 = sbr.rel (0) target = $region73
    $region72: #{tpu_custom_call.1} parent=1 // pred_region
      %s1671 = ssub.s32 32, 32
      %1672 = vsyncadd [#allocation6], %s1671
      %s1674 = sshll.u32 [#allocation5], 4
      %s1675 = int_to_ptr.vmem [resolvable:$true] %s1674
      %1677 = dma.vmem_to_hbm [thread:$0]  %s1675, 32, %s17, [#allocation6]
    $region73: #{tpu_custom_call.1} parent=1 // pred_fallthru
      _
    // Predicated region
    $region74: #{tpu_custom_call.1} parent=1 // pred_check
      _
    $region75: #{tpu_custom_call.1} parent=1 // pred_check_branch
      %1679 = sbr.rel (0) target = $region77
    $region76: #{tpu_custom_call.1} parent=1 // pred_region
      %s1681 = ssub.s32 32, 32
      %1682 = vsyncadd [#allocation6], %s1681
      %s1684 = sshll.u32 [#allocation7], 4
      %s1685 = int_to_ptr.vmem [resolvable:$true] %s1684
      %1687 = dma.vmem_to_hbm [thread:$0]  %s1685, 32, %s18, [#allocation6]
    $region77: #{tpu_custom_call.1} parent=1 // pred_fallthru
      _
    // Predicated region
    $region78: #{tpu_custom_call.1} parent=1 // pred_check
      _
    $region79: #{tpu_custom_call.1} parent=1 // pred_check_branch
      %1689 = sbr.rel (0) target = $region81
    $region80: #{tpu_custom_call.1} parent=1 // pred_region
      %1690 = dma.done [#allocation4], 256
    $region81: #{tpu_custom_call.1} parent=1 // pred_fallthru
      _
    // Predicated region
    $region82: #{tpu_custom_call.1} parent=1 // pred_check
      _
    $region83: #{tpu_custom_call.1} parent=1 // pred_check_branch
      %1692 = sbr.rel (0) target = $region85
    $region84: #{tpu_custom_call.1} parent=1 // pred_region
      %1693 = dma.done [#allocation6], 32
    $region85: #{tpu_custom_call.1} parent=1 // pred_fallthru
      _
    // Predicated region
    $region86: #{tpu_custom_call.1} parent=1 // pred_check
      _
    $region87: #{tpu_custom_call.1} parent=1 // pred_check_branch
      %1695 = sbr.rel (0) target = $region89
    $region88: #{tpu_custom_call.1} parent=1 // pred_region
      %1696 = dma.done [#allocation6], 32
    $region89: #{tpu_custom_call.1} parent=1 // pred_fallthru
      _
    %1697 = vsyncpa [#allocation4], 1
    %1698 = vsyncpa [#allocation6], 1

</llo_original>
